<compile_context>
chip_gen: v7x
topology: tpu7x:2x2x1
jax: 0.10.0
libtpu: 0.0.40
codegen_flags: <defaults>
</compile_context>

<pallas_src>
import jax
import jax.numpy as jnp
from jax import lax
from jax.experimental import pallas as pl
from jax.experimental.pallas import tpu as pltpu

# ----- small, lane-friendly shapes implied by the module -----
B = 2              # batch
T = 8              # seq_len
C = 3              # input channels (mobilenet expects RGB)
H = W = 16         # spatial
OH = OW = 8        # after stride-2 3x3 conv (pad=1)
K_RAW = 9 * C      # im2col contraction dim = 27
K_PAD = 32         # zero-padded contraction dim (lane/MXU friendly)
MID = 32           # stand-in backbone mid channels
FEAT = 128         # stand-in for mobilenet's 1280-d feature
HID = 32           # stand-in for hidden_dim=256
NCLS = 2           # num_classes
ROWS_PER_B = T * OH * OW     # 512 im2col rows per batch sample
N_ROW = B * ROWS_PER_B       # 1024 im2col rows total


# ---------------------------------------------------------------------------
# Fused per-sample kernel: CNN (im2col matmul chain, bf16 MXU) + ReLU6 +
# spatial max + LSTM (input proj hoisted, single-sigmoid gates) + Linear.
# grid=(B,): one program per batch sample; everything stays in VMEM.
# ---------------------------------------------------------------------------
def fused_kernel(p_ref, wih_ref, wslab_ref, bias_ref, out_ref):
    # ---- unpack packed parameter slabs (static slices, no data movement) ----
    wslab = wslab_ref[...]                         # (128, 128) bf16
    w1  = wslab[0 * MID:1 * MID, 0:MID]            # (32, 32)
    w2  = wslab[1 * MID:2 * MID, :]                # (32, 128)
    whh = wslab[2 * MID:3 * MID, :]                # (32, 128)  hoisted, read once
    wfc = wslab[3 * MID:4 * MID, 0:NCLS]           # (32, 2)
    bias = bias_ref[...]                           # (4, 128) f32
    b1  = bias[0:1, 0:MID]
    b2  = bias[1:2, :]
    bg  = bias[2:3, :]
    bfc = bias[3:4, 0:NCLS]

    # ---- CNN stage over this sample's T frames at once ----
    p = p_ref[...]                                 # (512, 32) bf16
    h1 = jnp.dot(p, w1, preferred_element_type=jnp.float32) + b1
    h1 = jnp.clip(h1, 0.0, 6.0)                    # ReLU6 (f32 on VPU)
    h2 = jnp.dot(h1.astype(jnp.bfloat16), w2,
                 preferred_element_type=jnp.float32) + b2
    h2 = jnp.clip(h2, 0.0, 6.0)                    # (512, 128) f32
    # AdaptiveMaxPool2d((1,1)) == max over the 64 spatial positions per frame
    feats = jnp.max(h2.reshape(T, OH * OW, FEAT), axis=1)      # (8, 128) f32

    # ---- LSTM: input projection hoisted out of the recurrence ----
    gx = jnp.dot(feats.astype(jnp.bfloat16), wih_ref[...],
                 preferred_element_type=jnp.float32) + bg      # (8, 128) f32

    # gate order (PyTorch): [i, f, g, o]; tanh(x) = 2*sigmoid(2x) - 1, so one
    # EUP sigmoid pass over the full (1,128) gates vreg per step suffices.
    lane = lax.broadcasted_iota(jnp.int32, (1, 4 * HID), 1)
    gm = ((lane >= 2 * HID) & (lane < 3 * HID)).astype(jnp.float32)
    scale_g = 1.0 + gm                             # 2 on g lanes, 1 elsewhere

    h = jnp.zeros((1, HID), jnp.float32)
    c = jnp.zeros((1, HID), jnp.float32)
    for t in range(T):                             # T=8, fully static unroll
        gates = gx[t:t + 1, :] + jnp.dot(h.astype(jnp.bfloat16), whh,
                                         preferred_element_type=jnp.float32)
        s = jax.nn.sigmoid(gates * scale_g)        # single EUP pass on (1,128)
        act = s * scale_g - gm                     # sigmoid on i,f,o; tanh on g
        i_g = act[:, 0 * HID:1 * HID]
        f_g = act[:, 1 * HID:2 * HID]
        g_g = act[:, 2 * HID:3 * HID]
        o_g = act[:, 3 * HID:4 * HID]
        c = f_g * c + i_g * g_g
        h = o_g * jnp.tanh(c)

    # ---- final Linear on h_T ----
    logits = jnp.dot(h.astype(jnp.bfloat16), wfc,
                     preferred_element_type=jnp.float32) + bfc  # (1, 2) f32
    out_ref[...] = logits[None]                    # (1, 1, 2) block


def conv_lstm_forward(patches, params):
    out = pl.pallas_call(
        fused_kernel,
        out_shape=jax.ShapeDtypeStruct((B, 1, NCLS), jnp.float32),
        grid=(B,),
        in_specs=[
            pl.BlockSpec((ROWS_PER_B, K_PAD), lambda b: (b, 0)),   # patches
            pl.BlockSpec((FEAT, 4 * HID), lambda b: (0, 0)),       # w_ih^T
            pl.BlockSpec((4 * MID, FEAT), lambda b: (0, 0)),       # weight slab
            pl.BlockSpec((4, FEAT), lambda b: (0, 0)),             # bias slab
        ],
        out_specs=pl.BlockSpec((1, 1, NCLS), lambda b: (b, 0, 0)),
        compiler_params=pltpu.CompilerParams(
            dimension_semantics=("parallel",)),     # 2nd TensorCore on v7x
    )(patches, params["w_ih_t"], params["w_slab"], params["b_slab"])
    return out.reshape(B, NCLS)


# ---------------------------------------------------------------------------
# Glue: im2col patch extraction (3x3, stride 2, pad 1) in plain JAX (one fused
# XLA prologue), contraction dim zero-padded 27 -> 32 and emitted as bf16 so
# the HBM round trip and the in-kernel DMA are halved.
# ---------------------------------------------------------------------------
def extract_patches(frames_nchw):
    n = frames_nchw.shape[0]
    x = jnp.transpose(frames_nchw, (0, 2, 3, 1))            # NCHW -> NHWC
    x = jnp.pad(x, ((0, 0), (1, 1), (1, 1), (0, 0)))
    cols = []
    for dy in range(3):
        for dx in range(3):
            cols.append(x[:, dy:dy + 2 * OH:2, dx:dx + 2 * OW:2, :])
    p = jnp.stack(cols, axis=3)                             # (N, OH, OW, 9, C)
    p = p.reshape(n * OH * OW, K_RAW)                       # (1024, 27)
    p = jnp.pad(p, ((0, 0), (0, K_PAD - K_RAW)))            # (1024, 32)
    return p.astype(jnp.bfloat16)


def conv_lstm_classifier(x, params):
    # x: (B, T, C, H, W) float32  (matches the PyTorch module's input layout)
    frames = x.reshape(B * T, C, H, W)                      # b-major frame order
    patches = extract_patches(frames)                       # (1024, 32) bf16
    return conv_lstm_forward(patches, params)               # (B, NCLS)


def init_params(key):
    ks = jax.random.split(key, 8)
    s = 0.1
    # stand-in backbone: conv1 (MID, C, 3, 3), conv2 (FEAT, MID, 1, 1)
    conv1_w = jax.random.normal(ks[0], (MID, C, 3, 3), jnp.float32) * s
    conv1_b = jax.random.normal(ks[1], (MID,), jnp.float32) * s
    conv2_w = jax.random.normal(ks[2], (FEAT, MID, 1, 1), jnp.float32) * s
    conv2_b = jax.random.normal(ks[3], (FEAT,), jnp.float32) * s
    # LSTM (PyTorch layout): W_ih (4H, F), W_hh (4H, H), b_ih + b_hh (4H,)
    w_ih = jax.random.normal(ks[4], (4 * HID, FEAT), jnp.float32) * s
    w_hh = jax.random.normal(ks[5], (4 * HID, HID), jnp.float32) * s
    b_ih = jax.random.normal(ks[6], (4 * HID,), jnp.float32) * s
    b_hh = jnp.zeros((4 * HID,), jnp.float32)
    # fc: weight (NCLS, H), bias (NCLS,)
    w_fc = jax.random.normal(ks[7], (NCLS, HID), jnp.float32) * s
    b_fc = jnp.zeros((NCLS,), jnp.float32)

    # conv1 in im2col patch order (dy, dx, c_in) -> out, rows padded 27 -> 32
    w1 = jnp.transpose(conv1_w, (2, 3, 1, 0)).reshape(K_RAW, MID)
    w1 = jnp.pad(w1, ((0, K_PAD - K_RAW), (0, 0)))          # (32, 32)
    w2 = conv2_w.reshape(FEAT, MID).T                       # (32, 128)
    w_hh_t = w_hh.T                                         # (32, 128)
    w_fc_t = w_fc.T                                         # (32, 2)

    # --- pack the four small weight matrices into ONE (128,128) bf16 slab ---
    pad_lanes = lambda a: jnp.pad(a, ((0, 0), (0, FEAT - a.shape[1])))
    w_slab = jnp.concatenate(
        [pad_lanes(w1), w2, w_hh_t, pad_lanes(w_fc_t)],
        axis=0).astype(jnp.bfloat16)                        # (128, 128)

    # --- pack the four bias rows into ONE (4, 128) f32 slab ---
    pad_row = lambda a: jnp.pad(a, ((0, FEAT - a.shape[0]),))
    b_slab = jnp.stack(
        [pad_row(conv1_b), conv2_b, b_ih + b_hh, pad_row(b_fc)], axis=0)

    return {
        "w_ih_t": w_ih.T.astype(jnp.bfloat16),              # (128, 128) bf16
        "w_slab": w_slab,                                   # (128, 128) bf16
        "b_slab": b_slab,                                   # (4, 128)   f32
    }


if __name__ == "__main__":
    key = jax.random.PRNGKey(0)
    k_x, k_p = jax.random.split(key)
    x = jax.random.normal(k_x, (B, T, C, H, W), jnp.float32)
    params = init_params(k_p)
    logits = jax.jit(conv_lstm_classifier)(x, params)
    jax.block_until_ready(logits)
    assert logits.shape == (B, NCLS) and logits.dtype == jnp.float32
    assert bool(jnp.all(jnp.isfinite(logits)))
    print("KERNEL_OK")
</pallas_src>

<mosaic_0001>
module attributes {stable_mosaic.version = 11 : i64} {
  func.func @fused_kernel(%arg0: i32, %arg1: memref<512x32xbf16, #tpu.memory_space<vmem>>, %arg2: memref<128x128xbf16, #tpu.memory_space<vmem>>, %arg3: memref<128x128xbf16, #tpu.memory_space<vmem>>, %arg4: memref<4x128xf32, #tpu.memory_space<vmem>>, %arg5: memref<1x1x2xf32, #tpu.memory_space<vmem>>) attributes {dimension_semantics = [#tpu.dimension_semantics<parallel>], iteration_bounds = array<i64: 2>, scalar_prefetch = 0 : i64, scratch_operands = 0 : i64, tpu.core_type = #tpu.core_type<tc>, window_params = [{transform_indices = @transform_0, window_bounds = array<i64: 512, 32>}, {pipeline_mode = #tpu.pipeline_mode<synchronous>, transform_indices = @transform_1, window_bounds = array<i64: 128, 128>}, {pipeline_mode = #tpu.pipeline_mode<synchronous>, transform_indices = @transform_2, window_bounds = array<i64: 128, 128>}, {pipeline_mode = #tpu.pipeline_mode<synchronous>, transform_indices = @transform_3, window_bounds = array<i64: 4, 128>}, {transform_indices = @transform_4, window_bounds = array<i64: 1, 1, 2>}]} {
    %c0 = arith.constant 0 : index
    %c0_0 = arith.constant 0 : index
    %0 = vector.load %arg3[%c0, %c0_0] : memref<128x128xbf16, #tpu.memory_space<vmem>>, vector<128x128xbf16>
    %1 = vector.extract_strided_slice %0 {offsets = [0, 0], sizes = [32, 32], strides = [1, 1]} : vector<128x128xbf16> to vector<32x32xbf16>
    %2 = vector.extract_strided_slice %0 {offsets = [32, 0], sizes = [32, 128], strides = [1, 1]} : vector<128x128xbf16> to vector<32x128xbf16>
    %3 = vector.extract_strided_slice %0 {offsets = [64, 0], sizes = [32, 128], strides = [1, 1]} : vector<128x128xbf16> to vector<32x128xbf16>
    %4 = vector.extract_strided_slice %0 {offsets = [96, 0], sizes = [32, 2], strides = [1, 1]} : vector<128x128xbf16> to vector<32x2xbf16>
    %c0_1 = arith.constant 0 : index
    %c0_2 = arith.constant 0 : index
    %5 = vector.load %arg4[%c0_1, %c0_2] : memref<4x128xf32, #tpu.memory_space<vmem>>, vector<4x128xf32>
    %6 = vector.extract_strided_slice %5 {offsets = [0, 0], sizes = [1, 32], strides = [1, 1]} : vector<4x128xf32> to vector<1x32xf32>
    %7 = vector.extract_strided_slice %5 {offsets = [1, 0], sizes = [1, 128], strides = [1, 1]} : vector<4x128xf32> to vector<1x128xf32>
    %8 = vector.extract_strided_slice %5 {offsets = [2, 0], sizes = [1, 128], strides = [1, 1]} : vector<4x128xf32> to vector<1x128xf32>
    %9 = vector.extract_strided_slice %5 {offsets = [3, 0], sizes = [1, 2], strides = [1, 1]} : vector<4x128xf32> to vector<1x2xf32>
    %c0_3 = arith.constant 0 : index
    %c0_4 = arith.constant 0 : index
    %10 = vector.load %arg1[%c0_3, %c0_4] : memref<512x32xbf16, #tpu.memory_space<vmem>>, vector<512x32xbf16>
    %cst = arith.constant dense<0.000000e+00> : vector<512x32xf32>
    %11 = tpu.matmul %10, %1, %cst {dimension_numbers = #tpu.dot_dimension_numbers<[1], [0], [0], [1], [0, 0, 1, 1], [], []>} : vector<512x32xbf16>, vector<32x32xbf16>, vector<512x32xf32> -> vector<512x32xf32>
    %12 = vector.broadcast %6 : vector<1x32xf32> to vector<512x32xf32>
    %13 = arith.addf %11, %12 : vector<512x32xf32>
    %cst_5 = arith.constant 0.000000e+00 : f32
    %cst_6 = arith.constant 6.000000e+00 : f32
    %14 = vector.broadcast %cst_5 : f32 to vector<512x32xf32>
    %15 = arith.maximumf %14, %13 : vector<512x32xf32>
    %16 = vector.broadcast %cst_6 : f32 to vector<512x32xf32>
    %17 = arith.minimumf %16, %15 : vector<512x32xf32>
    %18 = arith.truncf %17 : vector<512x32xf32> to vector<512x32xbf16>
    %cst_7 = arith.constant dense<0.000000e+00> : vector<512x128xf32>
    %19 = tpu.matmul %18, %2, %cst_7 {dimension_numbers = #tpu.dot_dimension_numbers<[1], [0], [0], [1], [0, 0, 1, 1], [], []>} : vector<512x32xbf16>, vector<32x128xbf16>, vector<512x128xf32> -> vector<512x128xf32>
    %20 = vector.broadcast %7 : vector<1x128xf32> to vector<512x128xf32>
    %21 = arith.addf %19, %20 : vector<512x128xf32>
    %cst_8 = arith.constant 0.000000e+00 : f32
    %cst_9 = arith.constant 6.000000e+00 : f32
    %22 = vector.broadcast %cst_8 : f32 to vector<512x128xf32>
    %23 = arith.maximumf %22, %21 : vector<512x128xf32>
    %24 = vector.broadcast %cst_9 : f32 to vector<512x128xf32>
    %25 = arith.minimumf %24, %23 : vector<512x128xf32>
    %26 = vector.shape_cast %25 : vector<512x128xf32> to vector<8x64x128xf32>
    %cst_10 = arith.constant dense<0xFF800000> : vector<8x128xf32>
    %27 = vector.multi_reduction <maximumf>, %26, %cst_10 [1] : vector<8x64x128xf32> to vector<8x128xf32>
    %28 = arith.truncf %27 : vector<8x128xf32> to vector<8x128xbf16>
    %c0_11 = arith.constant 0 : index
    %c0_12 = arith.constant 0 : index
    %29 = vector.load %arg2[%c0_11, %c0_12] : memref<128x128xbf16, #tpu.memory_space<vmem>>, vector<128x128xbf16>
    %cst_13 = arith.constant dense<0.000000e+00> : vector<8x128xf32>
    %30 = tpu.matmul %28, %29, %cst_13 {dimension_numbers = #tpu.dot_dimension_numbers<[1], [0], [0], [1], [0, 0, 1, 1], [], []>} : vector<8x128xbf16>, vector<128x128xbf16>, vector<8x128xf32> -> vector<8x128xf32>
    %31 = vector.broadcast %8 : vector<1x128xf32> to vector<8x128xf32>
    %32 = arith.addf %30, %31 : vector<8x128xf32>
    %33 = tpu.iota {dimensions = array<i32: 1>} : vector<1x128xi32>
    %c64_i32 = arith.constant 64 : i32
    %34 = vector.broadcast %c64_i32 : i32 to vector<1x128xi32>
    %35 = arith.cmpi sge, %33, %34 : vector<1x128xi32>
    %c96_i32 = arith.constant 96 : i32
    %36 = vector.broadcast %c96_i32 : i32 to vector<1x128xi32>
    %37 = arith.cmpi slt, %33, %36 : vector<1x128xi32>
    %38 = arith.andi %35, %37 : vector<1x128xi1>
    %39 = arith.extui %38 : vector<1x128xi1> to vector<1x128xi32>
    %40 = arith.sitofp %39 : vector<1x128xi32> to vector<1x128xf32>
    %cst_14 = arith.constant 1.000000e+00 : f32
    %41 = vector.broadcast %cst_14 : f32 to vector<1x128xf32>
    %42 = arith.addf %41, %40 : vector<1x128xf32>
    %cst_15 = arith.constant 0.000000e+00 : f32
    %43 = vector.broadcast %cst_15 : f32 to vector<1x32xf32>
    %cst_16 = arith.constant 0.000000e+00 : f32
    %44 = vector.broadcast %cst_16 : f32 to vector<1x32xf32>
    %45 = vector.extract_strided_slice %32 {offsets = [0, 0], sizes = [1, 128], strides = [1, 1]} : vector<8x128xf32> to vector<1x128xf32>
    %46 = arith.truncf %43 : vector<1x32xf32> to vector<1x32xbf16>
    %cst_17 = arith.constant dense<0.000000e+00> : vector<1x128xf32>
    %47 = tpu.matmul %46, %3, %cst_17 {dimension_numbers = #tpu.dot_dimension_numbers<[1], [0], [0], [1], [0, 0, 1, 1], [], []>} : vector<1x32xbf16>, vector<32x128xbf16>, vector<1x128xf32> -> vector<1x128xf32>
    %48 = arith.addf %45, %47 : vector<1x128xf32>
    %49 = arith.mulf %48, %42 : vector<1x128xf32>
    %50 = arith.negf %49 : vector<1x128xf32>
    %51 = math.exp %50 : vector<1x128xf32>
    %cst_18 = arith.constant 1.000000e+00 : f32
    %52 = vector.broadcast %cst_18 : f32 to vector<1x128xf32>
    %53 = arith.addf %52, %51 : vector<1x128xf32>
    %54 = arith.divf %52, %53 : vector<1x128xf32>
    %55 = arith.mulf %54, %42 : vector<1x128xf32>
    %56 = arith.subf %55, %40 : vector<1x128xf32>
    %57 = vector.extract_strided_slice %56 {offsets = [0, 0], sizes = [1, 32], strides = [1, 1]} : vector<1x128xf32> to vector<1x32xf32>
    %58 = vector.extract_strided_slice %56 {offsets = [0, 32], sizes = [1, 32], strides = [1, 1]} : vector<1x128xf32> to vector<1x32xf32>
    %59 = vector.extract_strided_slice %56 {offsets = [0, 64], sizes = [1, 32], strides = [1, 1]} : vector<1x128xf32> to vector<1x32xf32>
    %60 = vector.extract_strided_slice %56 {offsets = [0, 96], sizes = [1, 32], strides = [1, 1]} : vector<1x128xf32> to vector<1x32xf32>
    %61 = arith.mulf %58, %44 : vector<1x32xf32>
    %62 = arith.mulf %57, %59 : vector<1x32xf32>
    %63 = arith.addf %61, %62 : vector<1x32xf32>
    %64 = math.tanh %63 : vector<1x32xf32>
    %65 = arith.mulf %60, %64 : vector<1x32xf32>
    %66 = vector.extract_strided_slice %32 {offsets = [1, 0], sizes = [1, 128], strides = [1, 1]} : vector<8x128xf32> to vector<1x128xf32>
    %67 = arith.truncf %65 : vector<1x32xf32> to vector<1x32xbf16>
    %cst_19 = arith.constant dense<0.000000e+00> : vector<1x128xf32>
    %68 = tpu.matmul %67, %3, %cst_19 {dimension_numbers = #tpu.dot_dimension_numbers<[1], [0], [0], [1], [0, 0, 1, 1], [], []>} : vector<1x32xbf16>, vector<32x128xbf16>, vector<1x128xf32> -> vector<1x128xf32>
    %69 = arith.addf %66, %68 : vector<1x128xf32>
    %70 = arith.mulf %69, %42 : vector<1x128xf32>
    %71 = arith.negf %70 : vector<1x128xf32>
    %72 = math.exp %71 : vector<1x128xf32>
    %cst_20 = arith.constant 1.000000e+00 : f32
    %73 = vector.broadcast %cst_20 : f32 to vector<1x128xf32>
    %74 = arith.addf %73, %72 : vector<1x128xf32>
    %75 = arith.divf %73, %74 : vector<1x128xf32>
    %76 = arith.mulf %75, %42 : vector<1x128xf32>
    %77 = arith.subf %76, %40 : vector<1x128xf32>
    %78 = vector.extract_strided_slice %77 {offsets = [0, 0], sizes = [1, 32], strides = [1, 1]} : vector<1x128xf32> to vector<1x32xf32>
    %79 = vector.extract_strided_slice %77 {offsets = [0, 32], sizes = [1, 32], strides = [1, 1]} : vector<1x128xf32> to vector<1x32xf32>
    %80 = vector.extract_strided_slice %77 {offsets = [0, 64], sizes = [1, 32], strides = [1, 1]} : vector<1x128xf32> to vector<1x32xf32>
    %81 = vector.extract_strided_slice %77 {offsets = [0, 96], sizes = [1, 32], strides = [1, 1]} : vector<1x128xf32> to vector<1x32xf32>
    %82 = arith.mulf %79, %63 : vector<1x32xf32>
    %83 = arith.mulf %78, %80 : vector<1x32xf32>
    %84 = arith.addf %82, %83 : vector<1x32xf32>
    %85 = math.tanh %84 : vector<1x32xf32>
    %86 = arith.mulf %81, %85 : vector<1x32xf32>
    %87 = vector.extract_strided_slice %32 {offsets = [2, 0], sizes = [1, 128], strides = [1, 1]} : vector<8x128xf32> to vector<1x128xf32>
    %88 = arith.truncf %86 : vector<1x32xf32> to vector<1x32xbf16>
    %cst_21 = arith.constant dense<0.000000e+00> : vector<1x128xf32>
    %89 = tpu.matmul %88, %3, %cst_21 {dimension_numbers = #tpu.dot_dimension_numbers<[1], [0], [0], [1], [0, 0, 1, 1], [], []>} : vector<1x32xbf16>, vector<32x128xbf16>, vector<1x128xf32> -> vector<1x128xf32>
    %90 = arith.addf %87, %89 : vector<1x128xf32>
    %91 = arith.mulf %90, %42 : vector<1x128xf32>
    %92 = arith.negf %91 : vector<1x128xf32>
    %93 = math.exp %92 : vector<1x128xf32>
    %cst_22 = arith.constant 1.000000e+00 : f32
    %94 = vector.broadcast %cst_22 : f32 to vector<1x128xf32>
    %95 = arith.addf %94, %93 : vector<1x128xf32>
    %96 = arith.divf %94, %95 : vector<1x128xf32>
    %97 = arith.mulf %96, %42 : vector<1x128xf32>
    %98 = arith.subf %97, %40 : vector<1x128xf32>
    %99 = vector.extract_strided_slice %98 {offsets = [0, 0], sizes = [1, 32], strides = [1, 1]} : vector<1x128xf32> to vector<1x32xf32>
    %100 = vector.extract_strided_slice %98 {offsets = [0, 32], sizes = [1, 32], strides = [1, 1]} : vector<1x128xf32> to vector<1x32xf32>
    %101 = vector.extract_strided_slice %98 {offsets = [0, 64], sizes = [1, 32], strides = [1, 1]} : vector<1x128xf32> to vector<1x32xf32>
    %102 = vector.extract_strided_slice %98 {offsets = [0, 96], sizes = [1, 32], strides = [1, 1]} : vector<1x128xf32> to vector<1x32xf32>
    %103 = arith.mulf %100, %84 : vector<1x32xf32>
    %104 = arith.mulf %99, %101 : vector<1x32xf32>
    %105 = arith.addf %103, %104 : vector<1x32xf32>
    %106 = math.tanh %105 : vector<1x32xf32>
    %107 = arith.mulf %102, %106 : vector<1x32xf32>
    %108 = vector.extract_strided_slice %32 {offsets = [3, 0], sizes = [1, 128], strides = [1, 1]} : vector<8x128xf32> to vector<1x128xf32>
    %109 = arith.truncf %107 : vector<1x32xf32> to vector<1x32xbf16>
    %cst_23 = arith.constant dense<0.000000e+00> : vector<1x128xf32>
    %110 = tpu.matmul %109, %3, %cst_23 {dimension_numbers = #tpu.dot_dimension_numbers<[1], [0], [0], [1], [0, 0, 1, 1], [], []>} : vector<1x32xbf16>, vector<32x128xbf16>, vector<1x128xf32> -> vector<1x128xf32>
    %111 = arith.addf %108, %110 : vector<1x128xf32>
    %112 = arith.mulf %111, %42 : vector<1x128xf32>
    %113 = arith.negf %112 : vector<1x128xf32>
    %114 = math.exp %113 : vector<1x128xf32>
    %cst_24 = arith.constant 1.000000e+00 : f32
    %115 = vector.broadcast %cst_24 : f32 to vector<1x128xf32>
    %116 = arith.addf %115, %114 : vector<1x128xf32>
    %117 = arith.divf %115, %116 : vector<1x128xf32>
    %118 = arith.mulf %117, %42 : vector<1x128xf32>
    %119 = arith.subf %118, %40 : vector<1x128xf32>
    %120 = vector.extract_strided_slice %119 {offsets = [0, 0], sizes = [1, 32], strides = [1, 1]} : vector<1x128xf32> to vector<1x32xf32>
    %121 = vector.extract_strided_slice %119 {offsets = [0, 32], sizes = [1, 32], strides = [1, 1]} : vector<1x128xf32> to vector<1x32xf32>
    %122 = vector.extract_strided_slice %119 {offsets = [0, 64], sizes = [1, 32], strides = [1, 1]} : vector<1x128xf32> to vector<1x32xf32>
    %123 = vector.extract_strided_slice %119 {offsets = [0, 96], sizes = [1, 32], strides = [1, 1]} : vector<1x128xf32> to vector<1x32xf32>
    %124 = arith.mulf %121, %105 : vector<1x32xf32>
    %125 = arith.mulf %120, %122 : vector<1x32xf32>
    %126 = arith.addf %124, %125 : vector<1x32xf32>
    %127 = math.tanh %126 : vector<1x32xf32>
    %128 = arith.mulf %123, %127 : vector<1x32xf32>
    %129 = vector.extract_strided_slice %32 {offsets = [4, 0], sizes = [1, 128], strides = [1, 1]} : vector<8x128xf32> to vector<1x128xf32>
    %130 = arith.truncf %128 : vector<1x32xf32> to vector<1x32xbf16>
    %cst_25 = arith.constant dense<0.000000e+00> : vector<1x128xf32>
    %131 = tpu.matmul %130, %3, %cst_25 {dimension_numbers = #tpu.dot_dimension_numbers<[1], [0], [0], [1], [0, 0, 1, 1], [], []>} : vector<1x32xbf16>, vector<32x128xbf16>, vector<1x128xf32> -> vector<1x128xf32>
    %132 = arith.addf %129, %131 : vector<1x128xf32>
    %133 = arith.mulf %132, %42 : vector<1x128xf32>
    %134 = arith.negf %133 : vector<1x128xf32>
    %135 = math.exp %134 : vector<1x128xf32>
    %cst_26 = arith.constant 1.000000e+00 : f32
    %136 = vector.broadcast %cst_26 : f32 to vector<1x128xf32>
    %137 = arith.addf %136, %135 : vector<1x128xf32>
    %138 = arith.divf %136, %137 : vector<1x128xf32>
    %139 = arith.mulf %138, %42 : vector<1x128xf32>
    %140 = arith.subf %139, %40 : vector<1x128xf32>
    %141 = vector.extract_strided_slice %140 {offsets = [0, 0], sizes = [1, 32], strides = [1, 1]} : vector<1x128xf32> to vector<1x32xf32>
    %142 = vector.extract_strided_slice %140 {offsets = [0, 32], sizes = [1, 32], strides = [1, 1]} : vector<1x128xf32> to vector<1x32xf32>
    %143 = vector.extract_strided_slice %140 {offsets = [0, 64], sizes = [1, 32], strides = [1, 1]} : vector<1x128xf32> to vector<1x32xf32>
    %144 = vector.extract_strided_slice %140 {offsets = [0, 96], sizes = [1, 32], strides = [1, 1]} : vector<1x128xf32> to vector<1x32xf32>
    %145 = arith.mulf %142, %126 : vector<1x32xf32>
    %146 = arith.mulf %141, %143 : vector<1x32xf32>
    %147 = arith.addf %145, %146 : vector<1x32xf32>
    %148 = math.tanh %147 : vector<1x32xf32>
    %149 = arith.mulf %144, %148 : vector<1x32xf32>
    %150 = vector.extract_strided_slice %32 {offsets = [5, 0], sizes = [1, 128], strides = [1, 1]} : vector<8x128xf32> to vector<1x128xf32>
    %151 = arith.truncf %149 : vector<1x32xf32> to vector<1x32xbf16>
    %cst_27 = arith.constant dense<0.000000e+00> : vector<1x128xf32>
    %152 = tpu.matmul %151, %3, %cst_27 {dimension_numbers = #tpu.dot_dimension_numbers<[1], [0], [0], [1], [0, 0, 1, 1], [], []>} : vector<1x32xbf16>, vector<32x128xbf16>, vector<1x128xf32> -> vector<1x128xf32>
    %153 = arith.addf %150, %152 : vector<1x128xf32>
    %154 = arith.mulf %153, %42 : vector<1x128xf32>
    %155 = arith.negf %154 : vector<1x128xf32>
    %156 = math.exp %155 : vector<1x128xf32>
    %cst_28 = arith.constant 1.000000e+00 : f32
    %157 = vector.broadcast %cst_28 : f32 to vector<1x128xf32>
    %158 = arith.addf %157, %156 : vector<1x128xf32>
    %159 = arith.divf %157, %158 : vector<1x128xf32>
    %160 = arith.mulf %159, %42 : vector<1x128xf32>
    %161 = arith.subf %160, %40 : vector<1x128xf32>
    %162 = vector.extract_strided_slice %161 {offsets = [0, 0], sizes = [1, 32], strides = [1, 1]} : vector<1x128xf32> to vector<1x32xf32>
    %163 = vector.extract_strided_slice %161 {offsets = [0, 32], sizes = [1, 32], strides = [1, 1]} : vector<1x128xf32> to vector<1x32xf32>
    %164 = vector.extract_strided_slice %161 {offsets = [0, 64], sizes = [1, 32], strides = [1, 1]} : vector<1x128xf32> to vector<1x32xf32>
    %165 = vector.extract_strided_slice %161 {offsets = [0, 96], sizes = [1, 32], strides = [1, 1]} : vector<1x128xf32> to vector<1x32xf32>
    %166 = arith.mulf %163, %147 : vector<1x32xf32>
    %167 = arith.mulf %162, %164 : vector<1x32xf32>
    %168 = arith.addf %166, %167 : vector<1x32xf32>
    %169 = math.tanh %168 : vector<1x32xf32>
    %170 = arith.mulf %165, %169 : vector<1x32xf32>
    %171 = vector.extract_strided_slice %32 {offsets = [6, 0], sizes = [1, 128], strides = [1, 1]} : vector<8x128xf32> to vector<1x128xf32>
    %172 = arith.truncf %170 : vector<1x32xf32> to vector<1x32xbf16>
    %cst_29 = arith.constant dense<0.000000e+00> : vector<1x128xf32>
    %173 = tpu.matmul %172, %3, %cst_29 {dimension_numbers = #tpu.dot_dimension_numbers<[1], [0], [0], [1], [0, 0, 1, 1], [], []>} : vector<1x32xbf16>, vector<32x128xbf16>, vector<1x128xf32> -> vector<1x128xf32>
    %174 = arith.addf %171, %173 : vector<1x128xf32>
    %175 = arith.mulf %174, %42 : vector<1x128xf32>
    %176 = arith.negf %175 : vector<1x128xf32>
    %177 = math.exp %176 : vector<1x128xf32>
    %cst_30 = arith.constant 1.000000e+00 : f32
    %178 = vector.broadcast %cst_30 : f32 to vector<1x128xf32>
    %179 = arith.addf %178, %177 : vector<1x128xf32>
    %180 = arith.divf %178, %179 : vector<1x128xf32>
    %181 = arith.mulf %180, %42 : vector<1x128xf32>
    %182 = arith.subf %181, %40 : vector<1x128xf32>
    %183 = vector.extract_strided_slice %182 {offsets = [0, 0], sizes = [1, 32], strides = [1, 1]} : vector<1x128xf32> to vector<1x32xf32>
    %184 = vector.extract_strided_slice %182 {offsets = [0, 32], sizes = [1, 32], strides = [1, 1]} : vector<1x128xf32> to vector<1x32xf32>
    %185 = vector.extract_strided_slice %182 {offsets = [0, 64], sizes = [1, 32], strides = [1, 1]} : vector<1x128xf32> to vector<1x32xf32>
    %186 = vector.extract_strided_slice %182 {offsets = [0, 96], sizes = [1, 32], strides = [1, 1]} : vector<1x128xf32> to vector<1x32xf32>
    %187 = arith.mulf %184, %168 : vector<1x32xf32>
    %188 = arith.mulf %183, %185 : vector<1x32xf32>
    %189 = arith.addf %187, %188 : vector<1x32xf32>
    %190 = math.tanh %189 : vector<1x32xf32>
    %191 = arith.mulf %186, %190 : vector<1x32xf32>
    %192 = vector.extract_strided_slice %32 {offsets = [7, 0], sizes = [1, 128], strides = [1, 1]} : vector<8x128xf32> to vector<1x128xf32>
    %193 = arith.truncf %191 : vector<1x32xf32> to vector<1x32xbf16>
    %cst_31 = arith.constant dense<0.000000e+00> : vector<1x128xf32>
    %194 = tpu.matmul %193, %3, %cst_31 {dimension_numbers = #tpu.dot_dimension_numbers<[1], [0], [0], [1], [0, 0, 1, 1], [], []>} : vector<1x32xbf16>, vector<32x128xbf16>, vector<1x128xf32> -> vector<1x128xf32>
    %195 = arith.addf %192, %194 : vector<1x128xf32>
    %196 = arith.mulf %195, %42 : vector<1x128xf32>
    %197 = arith.negf %196 : vector<1x128xf32>
    %198 = math.exp %197 : vector<1x128xf32>
    %cst_32 = arith.constant 1.000000e+00 : f32
    %199 = vector.broadcast %cst_32 : f32 to vector<1x128xf32>
    %200 = arith.addf %199, %198 : vector<1x128xf32>
    %201 = arith.divf %199, %200 : vector<1x128xf32>
    %202 = arith.mulf %201, %42 : vector<1x128xf32>
    %203 = arith.subf %202, %40 : vector<1x128xf32>
    %204 = vector.extract_strided_slice %203 {offsets = [0, 0], sizes = [1, 32], strides = [1, 1]} : vector<1x128xf32> to vector<1x32xf32>
    %205 = vector.extract_strided_slice %203 {offsets = [0, 32], sizes = [1, 32], strides = [1, 1]} : vector<1x128xf32> to vector<1x32xf32>
    %206 = vector.extract_strided_slice %203 {offsets = [0, 64], sizes = [1, 32], strides = [1, 1]} : vector<1x128xf32> to vector<1x32xf32>
    %207 = vector.extract_strided_slice %203 {offsets = [0, 96], sizes = [1, 32], strides = [1, 1]} : vector<1x128xf32> to vector<1x32xf32>
    %208 = arith.mulf %205, %189 : vector<1x32xf32>
    %209 = arith.mulf %204, %206 : vector<1x32xf32>
    %210 = arith.addf %208, %209 : vector<1x32xf32>
    %211 = math.tanh %210 : vector<1x32xf32>
    %212 = arith.mulf %207, %211 : vector<1x32xf32>
    %213 = arith.truncf %212 : vector<1x32xf32> to vector<1x32xbf16>
    %cst_33 = arith.constant dense<0.000000e+00> : vector<1x2xf32>
    %214 = tpu.matmul %213, %4, %cst_33 {dimension_numbers = #tpu.dot_dimension_numbers<[1], [0], [0], [1], [0, 0, 1, 1], [], []>} : vector<1x32xbf16>, vector<32x2xbf16>, vector<1x2xf32> -> vector<1x2xf32>
    %215 = arith.addf %214, %9 : vector<1x2xf32>
    %216 = vector.shape_cast %215 : vector<1x2xf32> to vector<1x1x2xf32>
    %c0_34 = arith.constant 0 : index
    %c0_35 = arith.constant 0 : index
    %c0_36 = arith.constant 0 : index
    %217 = vector.load %arg5[%c0_34, %c0_35, %c0_36] : memref<1x1x2xf32, #tpu.memory_space<vmem>>, vector<1x1x2xf32>
    tpu.vector_store %arg5[%c0_34, %c0_35, %c0_36], %216 {strides = array<i32>} : memref<1x1x2xf32, #tpu.memory_space<vmem>>, vector<1x1x2xf32>,
    return
  }
  func.func @transform_0(%arg0: i32) -> (i32, i32) {
    %c0_i32 = arith.constant 0 : i32
    %c0_i32_0 = arith.constant 0 : i32
    return %arg0, %c0_i32 : i32, i32
  }
  func.func @transform_1(%arg0: i32) -> (i32, i32) {
    %c0_i32 = arith.constant 0 : i32
    %c0_i32_0 = arith.constant 0 : i32
    %c0_i32_1 = arith.constant 0 : i32
    return %c0_i32, %c0_i32_0 : i32, i32
  }
  func.func @transform_2(%arg0: i32) -> (i32, i32) {
    %c0_i32 = arith.constant 0 : i32
    %c0_i32_0 = arith.constant 0 : i32
    %c0_i32_1 = arith.constant 0 : i32
    return %c0_i32, %c0_i32_0 : i32, i32
  }
  func.func @transform_3(%arg0: i32) -> (i32, i32) {
    %c0_i32 = arith.constant 0 : i32
    %c0_i32_0 = arith.constant 0 : i32
    %c0_i32_1 = arith.constant 0 : i32
    return %c0_i32, %c0_i32_0 : i32, i32
  }
  func.func @transform_4(%arg0: i32) -> (i32, i32, i32) {
    %c0_i32 = arith.constant 0 : i32
    %c0_i32_0 = arith.constant 0 : i32
    %c0_i32_1 = arith.constant 0 : i32
    return %arg0, %c0_i32, %c0_i32_0 : i32, i32, i32
  }
}

</mosaic_0001>

<llo_original>
// kernel: conv_lstm_classifier.1
$region0: #{conv_lstm_classifier.1}
  #allocation0 [shape = 'u32[]', space=smem, size = 0x4, offset = 0x4, fixed_abs, tag = 'smem constant byte address 0x4 - core index']
  #allocation1 [shape = 'u32[144,128]{1,0:T(1,128)}', space=vmem, size = 0x12000, scoped, tag = 'internal scratch']
  %s0 = inlined_call_operand.vmem [shape: bf16[1024,32], index: 0, kind: input, shape index: {}]
  %s1 = inlined_call_operand.vmem [shape: bf16[128,128], index: 1, kind: input, shape index: {}]
  %s2 = inlined_call_operand.vmem [shape: bf16[128,128], index: 2, kind: input, shape index: {}]
  %s3 = inlined_call_operand.vmem [shape: f32[4,128], index: 3, kind: input, shape index: {}]
  %s4 = inlined_call_operand.hbm [shape: f32[2,1,2], index: 4, kind: output, shape index: {}]
  %s5 = sld [smem:[#allocation0]]
  $region49: #{conv_lstm_classifier.1} parent=0
    _
  %s7 = ssub.s32 1, %s5
  %s8 = scalar_select 0, %s7, %s5
  $region1: #{conv_lstm_classifier.1} parent=0
    #allocation2 [shape = 'u8[1024]{0}', space=vmem, size = 0x400, scoped, tag = 'output window, operand 0']
    #allocation3 [shape = 's32[2]{0}', space=sflag, size = 0x8, scoped, tag = 'scoped memory for conv_lstm_classifier.1']
    %9 = vsyncpa [#allocation3], 0
    %s10 = scalar_lea.sflag [#allocation3], 1
    %11 = vsyncpa %s10, 0
    loop: start=0, step=1, limit=4
    $region2: #{conv_lstm_classifier.1} parent=1 // loop_pre_header
      _
    $region3: #{conv_lstm_classifier.1} parent=1 // loop_header
      %s13 = sphi 0, %s17
      %p14 = scmp.ge.s32.totalorder %s13, 4
      %s23 = sphi 0, %s25
      %s26 = sphi 0, %s23
      %s27 = sphi 0, %s26
      %s43 = sphi 0, %s27
      %s47 = sphi 0, %s47
      %s49 = sphi 0, %s47
      %s50 = sphi 0, %s49
      %s64 = sphi 0, %s50
      %s68 = sphi 0, %s68
      %s70 = sphi 0, %s68
      %s71 = sphi 0, %s70
      %s85 = sphi 0, %s71
      %s89 = sphi 0, %s89
      %s91 = sphi 0, %s89
      %s92 = sphi 0, %s91
      %s106 = sphi 0, %s92
      %s112 = sphi 0, %s114
      %s115 = sphi 0, %s112
      %s116 = sphi 0, %s115
      %s132 = sphi 0, %s116
    $region4: #{conv_lstm_classifier.1} parent=1 // loop_header_branch
      %16 = sbr.rel (%p14) target = $region8
    $region5: #{conv_lstm_classifier.1} parent=1 // loop_body
      %s18 = ssub.s32 %s13, 1
      %s19 = ssub.s32 %s13, 2
      %s20 = sadd.s32 %s13, 1
      %s21 = ssub.s32 %s13, %s20
      %p22 = scmp.eq.s32.totalorder %s21, 0
      %s24 = sadd.s32 %s23, 1
      %s25 = scalar_select %p22, %s23, %s24
      %p28 = pneg %p22
      %p29 = scmp.eq.s32.totalorder %s13, 1
      %p30 = por %p28, %p29
      %p31 = scmp.ne.s32.totalorder %s23, %s26
      %p32 = scmp.eq.s32.totalorder %s13, 0
      %p33 = por %p31, %p32
      %p34 = scmp.ne.s32.totalorder %s23, %s26
      %p35 = scmp.eq.s32.totalorder %s18, 1
      %p36 = por %p34, %p35
      %p37 = scmp.ne.s32.totalorder %s26, %s27
      %p38 = scmp.eq.s32.totalorder %s18, 0
      %p39 = por %p37, %p38
      %p40 = scmp.ne.s32.totalorder %s26, %s27
      %p41 = scmp.eq.s32.totalorder %s19, 1
      %p42 = por %p40, %p41
      %p44 = scmp.ne.s32.totalorder %s27, %s43
      %p45 = scmp.eq.s32.totalorder %s19, 0
      %p46 = por %p44, %p45
      %s48 = sadd.s32 %s47, 1
      %p51 = scmp.eq.s32.totalorder %s13, 1
      %p52 = scmp.ne.s32.totalorder %s47, %s49
      %p53 = scmp.eq.s32.totalorder %s13, 0
      %p54 = por %p52, %p53
      %p55 = scmp.ne.s32.totalorder %s47, %s49
      %p56 = scmp.eq.s32.totalorder %s18, 1
      %p57 = por %p55, %p56
      %p58 = scmp.ne.s32.totalorder %s49, %s50
      %p59 = scmp.eq.s32.totalorder %s18, 0
      %p60 = por %p58, %p59
      %p61 = scmp.ne.s32.totalorder %s49, %s50
      %p62 = scmp.eq.s32.totalorder %s19, 1
      %p63 = por %p61, %p62
      %p65 = scmp.ne.s32.totalorder %s50, %s64
      %p66 = scmp.eq.s32.totalorder %s19, 0
      %p67 = por %p65, %p66
      %s69 = sadd.s32 %s68, 1
      %p72 = scmp.eq.s32.totalorder %s13, 1
      %p73 = scmp.ne.s32.totalorder %s68, %s70
      %p74 = scmp.eq.s32.totalorder %s13, 0
      %p75 = por %p73, %p74
      %p76 = scmp.ne.s32.totalorder %s68, %s70
      %p77 = scmp.eq.s32.totalorder %s18, 1
      %p78 = por %p76, %p77
      %p79 = scmp.ne.s32.totalorder %s70, %s71
      %p80 = scmp.eq.s32.totalorder %s18, 0
      %p81 = por %p79, %p80
      %p82 = scmp.ne.s32.totalorder %s70, %s71
      %p83 = scmp.eq.s32.totalorder %s19, 1
      %p84 = por %p82, %p83
      %p86 = scmp.ne.s32.totalorder %s71, %s85
      %p87 = scmp.eq.s32.totalorder %s19, 0
      %p88 = por %p86, %p87
      %s90 = sadd.s32 %s89, 1
      %p93 = scmp.eq.s32.totalorder %s13, 1
      %p94 = scmp.ne.s32.totalorder %s89, %s91
      %p95 = scmp.eq.s32.totalorder %s13, 0
      %p96 = por %p94, %p95
      %p97 = scmp.ne.s32.totalorder %s89, %s91
      %p98 = scmp.eq.s32.totalorder %s18, 1
      %p99 = por %p97, %p98
      %p100 = scmp.ne.s32.totalorder %s91, %s92
      %p101 = scmp.eq.s32.totalorder %s18, 0
      %p102 = por %p100, %p101
      %p103 = scmp.ne.s32.totalorder %s91, %s92
      %p104 = scmp.eq.s32.totalorder %s19, 1
      %p105 = por %p103, %p104
      %p107 = scmp.ne.s32.totalorder %s92, %s106
      %p108 = scmp.eq.s32.totalorder %s19, 0
      %p109 = por %p107, %p108
      %s110 = ssub.s32 %s13, %s20
      %p111 = scmp.eq.s32.totalorder %s110, 0
      %s113 = sadd.s32 %s112, 1
      %s114 = scalar_select %p111, %s112, %s113
      %p117 = pneg %p111
      %p118 = scmp.eq.s32.totalorder %s13, 1
      %p119 = por %p117, %p118
      %p120 = scmp.ne.s32.totalorder %s112, %s115
      %p121 = scmp.eq.s32.totalorder %s13, 0
      %p122 = por %p120, %p121
      %p123 = scmp.ne.s32.totalorder %s112, %s115
      %p124 = scmp.eq.s32.totalorder %s18, 1
      %p125 = por %p123, %p124
      %p126 = scmp.ne.s32.totalorder %s115, %s116
      %p127 = scmp.eq.s32.totalorder %s18, 0
      %p128 = por %p126, %p127
      %p129 = scmp.ne.s32.totalorder %s115, %s116
      %p130 = scmp.eq.s32.totalorder %s19, 1
      %p131 = por %p129, %p130
      %p133 = scmp.ne.s32.totalorder %s116, %s132
      %p134 = scmp.eq.s32.totalorder %s19, 0
      %p135 = por %p133, %p134
      %p136 = scmp.le.s32.totalorder 1, %s13
      %p137 = scmp.lt.s32.totalorder %s13, 3
      %p138 = pnand %p136, %p137
      %p139 = pneg %p138
      // Predicated region
      $region9: #{conv_lstm_classifier.1} parent=5 // pred_check
        _
      $region10: #{conv_lstm_classifier.1} parent=5 // pred_check_branch
        %141 = sbr.rel (%p138) target = $region12
      $region11: #{conv_lstm_classifier.1} parent=5 // pred_region
        %s142 = ssub.s32 %s13, 1
        // Predicated region
        $region13: #{conv_lstm_classifier.1} parent=11 // pred_check
          %p143 = pneg %p60
        $region14: #{conv_lstm_classifier.1} parent=11 // pred_check_branch
          %145 = sbr.rel (%p143) target = $region16
        $region15: #{conv_lstm_classifier.1} parent=11 // pred_region
          _
        $region16: #{conv_lstm_classifier.1} parent=11 // pred_fallthru
          _
        // Predicated region
        $region17: #{conv_lstm_classifier.1} parent=11 // pred_check
          %p146 = pneg %p81
        $region18: #{conv_lstm_classifier.1} parent=11 // pred_check_branch
          %148 = sbr.rel (%p146) target = $region20
        $region19: #{conv_lstm_classifier.1} parent=11 // pred_region
          _
        $region20: #{conv_lstm_classifier.1} parent=11 // pred_fallthru
          _
        // Predicated region
        $region21: #{conv_lstm_classifier.1} parent=11 // pred_check
          %p149 = pneg %p102
        $region22: #{conv_lstm_classifier.1} parent=11 // pred_check_branch
          %151 = sbr.rel (%p149) target = $region24
        $region23: #{conv_lstm_classifier.1} parent=11 // pred_region
          _
        $region24: #{conv_lstm_classifier.1} parent=11 // pred_fallthru
          _
      $region12: #{conv_lstm_classifier.1} parent=5 // pred_fallthru
        _
      %p152 = scmp.lt.s32.totalorder %s13, 2
      // Predicated region
      $region25: #{conv_lstm_classifier.1} parent=5 // pred_check
        %p153 = pneg %p152
      $region26: #{conv_lstm_classifier.1} parent=5 // pred_check_branch
        %155 = sbr.rel (%p153) target = $region28
      $region27: #{conv_lstm_classifier.1} parent=5 // pred_region
        // Predicated region
        $region29: #{conv_lstm_classifier.1} parent=27 // pred_check
          %p156 = pneg %p33
        $region30: #{conv_lstm_classifier.1} parent=27 // pred_check_branch
          %158 = sbr.rel (%p156) target = $region32
        $region31: #{conv_lstm_classifier.1} parent=27 // pred_region
          %s159 = smul.u32 64, %s13
          %p160 = scmp.lt.s32.totalorder %s159, 127
          %s161 = scalar_select %p160, %s159, 127
          %s162 = smul.addr %s161, 4
          %s163 = scalar_lea.vmem %s0, %s162
          %s164 = smul.u32 64, %s13
        $region32: #{conv_lstm_classifier.1} parent=27 // pred_fallthru
          _
      $region28: #{conv_lstm_classifier.1} parent=5 // pred_fallthru
        _
      %p165 = scmp.le.s32.totalorder 1, %s13
      %p166 = scmp.lt.s32.totalorder %s13, 3
      %p167 = pnand %p165, %p166
      %p168 = pneg %p167
      // Predicated region
      $region33: #{conv_lstm_classifier.1} parent=5 // pred_check
        _
      $region34: #{conv_lstm_classifier.1} parent=5 // pred_check_branch
        %170 = sbr.rel (%p167) target = $region36
      $region35: #{conv_lstm_classifier.1} parent=5 // pred_region
        %s171 = ssub.s32 %s13, 1
        %s172 = smul.u32 64, %s18
        %p173 = scmp.lt.s32.totalorder %s172, 127
        %s174 = scalar_select %p173, %s172, 127
        %s175 = smul.addr %s174, 4
        %s176 = scalar_lea.vmem %s0, %s175
        %p177 = pneg %p39
        %p178 = pneg %p36
        %p179 = pneg %p60
        %p180 = pneg %p57
        %p181 = pneg %p81
        %p182 = pneg %p78
        %p183 = pneg %p102
        %p184 = pneg %p99
        %p185 = pneg %p128
        %p186 = pneg %p125
        %s187 = sand.u32 %s115, 1
        %s188 = scalar_lea.sflag [#allocation3], %s187
        %s189 = sand.u32 %s115, 1
        %s190 = scalar_lea.vmem [#allocation2], %s189
        %s191 = smul.u32 64, %s18
        %p192 = scmp.lt.s32.totalorder %s191, 127
        %s193 = scalar_select %p192, %s191, 127
        %s194 = smul.addr %s193, 4
        %s195 = scalar_lea.vmem %s0, %s194
        %s196 = smul.u32 64, %s18
        %v198 = vld [vmem:[%s2] sm:$0xf]
        %v199 = vld [vmem:[%s2 + $0x4] sm:$0xf]
        %v200 = vld [vmem:[%s2 + $0x8] sm:$0xf]
        %v201 = vld [vmem:[%s2 + $0xc] sm:$0xf]
        %v202 = vld [vmem:[%s2 + $0x10] sm:$0xf]
        %v203 = vld [vmem:[%s2 + $0x14] sm:$0xf]
        %v204 = vld [vmem:[%s2 + $0x18] sm:$0xf]
        %v205 = vld [vmem:[%s2 + $0x1c] sm:$0xf]
        %v206 = vld [vmem:[%s2 + $0x20] sm:$0xf]
        %v207 = vld [vmem:[%s2 + $0x24] sm:$0xf]
        %v208 = vld [vmem:[%s2 + $0x28] sm:$0xf]
        %v209 = vld [vmem:[%s2 + $0x2c] sm:$0xf]
        %v210 = vld [vmem:[%s2 + $0x30] sm:$0xf]
        %v211 = vld [vmem:[%s2 + $0x34] sm:$0xf]
        %v212 = vld [vmem:[%s2 + $0x38] sm:$0xf]
        %v213 = vld [vmem:[%s2 + $0x3c] sm:$0xf]
        %v214 = vld [vmem:[%s3] sm:$0xf]
        %v215 = vld [vmem:[%s195] sm:$0xf]
        %v216 = vld [vmem:[%s195 + $0x4] sm:$0xf]
        %v217 = vld [vmem:[%s195 + $0x8] sm:$0xf]
        %v218 = vld [vmem:[%s195 + $0xc] sm:$0xf]
        %v219 = vld [vmem:[%s195 + $0x10] sm:$0xf]
        %v220 = vld [vmem:[%s195 + $0x14] sm:$0xf]
        %v221 = vld [vmem:[%s195 + $0x18] sm:$0xf]
        %v222 = vld [vmem:[%s195 + $0x1c] sm:$0xf]
        %v223 = vld [vmem:[%s195 + $0x20] sm:$0xf]
        %v224 = vld [vmem:[%s195 + $0x24] sm:$0xf]
        %v225 = vld [vmem:[%s195 + $0x28] sm:$0xf]
        %v226 = vld [vmem:[%s195 + $0x2c] sm:$0xf]
        %v227 = vld [vmem:[%s195 + $0x30] sm:$0xf]
        %v228 = vld [vmem:[%s195 + $0x34] sm:$0xf]
        %v229 = vld [vmem:[%s195 + $0x38] sm:$0xf]
        %v230 = vld [vmem:[%s195 + $0x3c] sm:$0xf]
        %v231 = vld [vmem:[%s195 + $0x40] sm:$0xf]
        %v232 = vld [vmem:[%s195 + $0x44] sm:$0xf]
        %v233 = vld [vmem:[%s195 + $0x48] sm:$0xf]
        %v234 = vld [vmem:[%s195 + $0x4c] sm:$0xf]
        %v235 = vld [vmem:[%s195 + $0x50] sm:$0xf]
        %v236 = vld [vmem:[%s195 + $0x54] sm:$0xf]
        %v237 = vld [vmem:[%s195 + $0x58] sm:$0xf]
        %v238 = vld [vmem:[%s195 + $0x5c] sm:$0xf]
        %v239 = vld [vmem:[%s195 + $0x60] sm:$0xf]
        %v240 = vld [vmem:[%s195 + $0x64] sm:$0xf]
        %v241 = vld [vmem:[%s195 + $0x68] sm:$0xf]
        %v242 = vld [vmem:[%s195 + $0x6c] sm:$0xf]
        %v243 = vld [vmem:[%s195 + $0x70] sm:$0xf]
        %v244 = vld [vmem:[%s195 + $0x74] sm:$0xf]
        %v245 = vld [vmem:[%s195 + $0x78] sm:$0xf]
        %v246 = vld [vmem:[%s195 + $0x7c] sm:$0xf]
        %v247 = vld [vmem:[%s195 + $0x80] sm:$0xf]
        %v248 = vld [vmem:[%s195 + $0x84] sm:$0xf]
        %v249 = vld [vmem:[%s195 + $0x88] sm:$0xf]
        %v250 = vld [vmem:[%s195 + $0x8c] sm:$0xf]
        %v251 = vld [vmem:[%s195 + $0x90] sm:$0xf]
        %v252 = vld [vmem:[%s195 + $0x94] sm:$0xf]
        %v253 = vld [vmem:[%s195 + $0x98] sm:$0xf]
        %v254 = vld [vmem:[%s195 + $0x9c] sm:$0xf]
        %v255 = vld [vmem:[%s195 + $0xa0] sm:$0xf]
        %v256 = vld [vmem:[%s195 + $0xa4] sm:$0xf]
        %v257 = vld [vmem:[%s195 + $0xa8] sm:$0xf]
        %v258 = vld [vmem:[%s195 + $0xac] sm:$0xf]
        %v259 = vld [vmem:[%s195 + $0xb0] sm:$0xf]
        %v260 = vld [vmem:[%s195 + $0xb4] sm:$0xf]
        %v261 = vld [vmem:[%s195 + $0xb8] sm:$0xf]
        %v262 = vld [vmem:[%s195 + $0xbc] sm:$0xf]
        %v263 = vld [vmem:[%s195 + $0xc0] sm:$0xf]
        %v264 = vld [vmem:[%s195 + $0xc4] sm:$0xf]
        %v265 = vld [vmem:[%s195 + $0xc8] sm:$0xf]
        %v266 = vld [vmem:[%s195 + $0xcc] sm:$0xf]
        %v267 = vld [vmem:[%s195 + $0xd0] sm:$0xf]
        %v268 = vld [vmem:[%s195 + $0xd4] sm:$0xf]
        %v269 = vld [vmem:[%s195 + $0xd8] sm:$0xf]
        %v270 = vld [vmem:[%s195 + $0xdc] sm:$0xf]
        %v271 = vld [vmem:[%s195 + $0xe0] sm:$0xf]
        %v272 = vld [vmem:[%s195 + $0xe4] sm:$0xf]
        %v273 = vld [vmem:[%s195 + $0xe8] sm:$0xf]
        %v274 = vld [vmem:[%s195 + $0xec] sm:$0xf]
        %v275 = vld [vmem:[%s195 + $0xf0] sm:$0xf]
        %v276 = vld [vmem:[%s195 + $0xf4] sm:$0xf]
        %v277 = vld [vmem:[%s195 + $0xf8] sm:$0xf]
        %v278 = vld [vmem:[%s195 + $0xfc] sm:$0xf]
        %v279 = vlaneseq
        %v280 = vshrl.u32 %v279, 7
        %v281 = vsub.s32 0, %v280
        %v282 = vrot.slane %v214, %v281
        %v347 = vunpack.c.l.b16 %v215
        %v348 = vunpack.c.l.b16 %v216
        %v349 = vunpack.c.l.b16 %v217
        %v350 = vunpack.c.l.b16 %v218
        %v351 = vunpack.c.l.b16 %v219
        %v352 = vunpack.c.l.b16 %v220
        %v353 = vunpack.c.l.b16 %v221
        %v354 = vunpack.c.l.b16 %v222
        %v355 = vunpack.c.l.b16 %v223
        %v356 = vunpack.c.l.b16 %v224
        %v357 = vunpack.c.l.b16 %v225
        %v358 = vunpack.c.l.b16 %v226
        %v359 = vunpack.c.l.b16 %v227
        %v360 = vunpack.c.l.b16 %v228
        %v361 = vunpack.c.l.b16 %v229
        %v362 = vunpack.c.l.b16 %v230
        %v363 = vunpack.c.l.b16 %v231
        %v364 = vunpack.c.l.b16 %v232
        %v365 = vunpack.c.l.b16 %v233
        %v366 = vunpack.c.l.b16 %v234
        %v367 = vunpack.c.l.b16 %v235
        %v368 = vunpack.c.l.b16 %v236
        %v369 = vunpack.c.l.b16 %v237
        %v370 = vunpack.c.l.b16 %v238
        %v371 = vunpack.c.l.b16 %v239
        %v372 = vunpack.c.l.b16 %v240
        %v373 = vunpack.c.l.b16 %v241
        %v374 = vunpack.c.l.b16 %v242
        %v375 = vunpack.c.l.b16 %v243
        %v376 = vunpack.c.l.b16 %v244
        %v377 = vunpack.c.l.b16 %v245
        %v378 = vunpack.c.l.b16 %v246
        %v379 = vunpack.c.l.b16 %v247
        %v380 = vunpack.c.l.b16 %v248
        %v381 = vunpack.c.l.b16 %v249
        %v382 = vunpack.c.l.b16 %v250
        %v383 = vunpack.c.l.b16 %v251
        %v384 = vunpack.c.l.b16 %v252
        %v385 = vunpack.c.l.b16 %v253
        %v386 = vunpack.c.l.b16 %v254
        %v387 = vunpack.c.l.b16 %v255
        %v388 = vunpack.c.l.b16 %v256
        %v389 = vunpack.c.l.b16 %v257
        %v390 = vunpack.c.l.b16 %v258
        %v391 = vunpack.c.l.b16 %v259
        %v392 = vunpack.c.l.b16 %v260
        %v393 = vunpack.c.l.b16 %v261
        %v394 = vunpack.c.l.b16 %v262
        %v395 = vunpack.c.l.b16 %v263
        %v396 = vunpack.c.l.b16 %v264
        %v397 = vunpack.c.l.b16 %v265
        %v398 = vunpack.c.l.b16 %v266
        %v399 = vunpack.c.l.b16 %v267
        %v400 = vunpack.c.l.b16 %v268
        %v401 = vunpack.c.l.b16 %v269
        %v402 = vunpack.c.l.b16 %v270
        %v403 = vunpack.c.l.b16 %v271
        %v404 = vunpack.c.l.b16 %v272
        %v405 = vunpack.c.l.b16 %v273
        %v406 = vunpack.c.l.b16 %v274
        %v407 = vunpack.c.l.b16 %v275
        %v408 = vunpack.c.l.b16 %v276
        %v409 = vunpack.c.l.b16 %v277
        %v410 = vunpack.c.l.b16 %v278
        %v411 = vpack.c.b16 %v348, %v347
        %v412 = vpack.c.b16 %v350, %v349
        %v413 = vpack.c.b16 %v352, %v351
        %v414 = vpack.c.b16 %v354, %v353
        %v415 = vpack.c.b16 %v356, %v355
        %v416 = vpack.c.b16 %v358, %v357
        %v417 = vpack.c.b16 %v360, %v359
        %v418 = vpack.c.b16 %v362, %v361
        %v419 = vpack.c.b16 %v364, %v363
        %v420 = vpack.c.b16 %v366, %v365
        %v421 = vpack.c.b16 %v368, %v367
        %v422 = vpack.c.b16 %v370, %v369
        %v423 = vpack.c.b16 %v372, %v371
        %v424 = vpack.c.b16 %v374, %v373
        %v425 = vpack.c.b16 %v376, %v375
        %v426 = vpack.c.b16 %v378, %v377
        %v427 = vpack.c.b16 %v380, %v379
        %v428 = vpack.c.b16 %v382, %v381
        %v429 = vpack.c.b16 %v384, %v383
        %v430 = vpack.c.b16 %v386, %v385
        %v431 = vpack.c.b16 %v388, %v387
        %v432 = vpack.c.b16 %v390, %v389
        %v433 = vpack.c.b16 %v392, %v391
        %v434 = vpack.c.b16 %v394, %v393
        %v435 = vpack.c.b16 %v396, %v395
        %v436 = vpack.c.b16 %v398, %v397
        %v437 = vpack.c.b16 %v400, %v399
        %v438 = vpack.c.b16 %v402, %v401
        %v439 = vpack.c.b16 %v404, %v403
        %v440 = vpack.c.b16 %v406, %v405
        %v441 = vpack.c.b16 %v408, %v407
        %v442 = vpack.c.b16 %v410, %v409
        %v447 = vunpack.c.l.b16 %v198
        %v448 = vunpack.c.l.b16 %v199
        %v449 = vunpack.c.l.b16 %v200
        %v450 = vunpack.c.l.b16 %v201
        %v451 = vpack.c.b16 %v448, %v447
        %v452 = vpack.c.b16 %v450, %v449
        %vm455 = vcmask 261120
        %v457 = vsel %vm455, %v411, 0
        %v460 = vsel %vm455, %v412, 0
        %v463 = vsel %vm455, %v413, 0
        %v466 = vsel %vm455, %v414, 0
        %v469 = vsel %vm455, %v415, 0
        %v472 = vsel %vm455, %v416, 0
        %v475 = vsel %vm455, %v417, 0
        %v478 = vsel %vm455, %v418, 0
        %v481 = vsel %vm455, %v419, 0
        %v484 = vsel %vm455, %v420, 0
        %v487 = vsel %vm455, %v421, 0
        %v490 = vsel %vm455, %v422, 0
        %v493 = vsel %vm455, %v423, 0
        %v496 = vsel %vm455, %v424, 0
        %v499 = vsel %vm455, %v425, 0
        %v502 = vsel %vm455, %v426, 0
        %v505 = vsel %vm455, %v427, 0
        %v508 = vsel %vm455, %v428, 0
        %v511 = vsel %vm455, %v429, 0
        %v514 = vsel %vm455, %v430, 0
        %v517 = vsel %vm455, %v431, 0
        %v520 = vsel %vm455, %v432, 0
        %v523 = vsel %vm455, %v433, 0
        %v526 = vsel %vm455, %v434, 0
        %v529 = vsel %vm455, %v435, 0
        %v532 = vsel %vm455, %v436, 0
        %v535 = vsel %vm455, %v437, 0
        %v538 = vsel %vm455, %v438, 0
        %v541 = vsel %vm455, %v439, 0
        %v544 = vsel %vm455, %v440, 0
        %v547 = vsel %vm455, %v441, 0
        %v550 = vsel %vm455, %v442, 0
        %552 = vmatprep.subr.bf16.mxu0 0
        %553 = vmatpush1.bf16.msra.mxu0 %v451
        %554 = vmatprep.subr.bf16.mxu0 0
        %555 = vmatpush1.bf16.msra.mxu0 %v452
        %556 = vmatprep.subr.bf16.mxu0 0
        %557 = vmatpush1.bf16.msra.mxu0 0
        %558 = vmatprep.subr.bf16.mxu0 0
        %559 = vmatpush1.bf16.msra.mxu0 0
        %560 = vmatprep.subr.bf16.mxu0 0
        %561 = vmatpush1.bf16.msra.mxu0 0
        %562 = vmatprep.subr.bf16.mxu0 0
        %563 = vmatpush1.bf16.msra.mxu0 0
        %564 = vmatprep.subr.bf16.mxu0 0
        %565 = vmatpush1.bf16.msra.mxu0 0
        %566 = vmatprep.subr.bf16.mxu0 0
        %567 = vmatpush1.bf16.msra.mxu0 0
        %568 = vmatprep.subr.bf16.mxu0 0
        %569 = vmatpush1.bf16.msra.mxu0 0
        %570 = vmatprep.subr.bf16.mxu0 0
        %571 = vmatpush1.bf16.msra.mxu0 0
        %572 = vmatprep.subr.bf16.mxu0 0
        %573 = vmatpush1.bf16.msra.mxu0 0
        %574 = vmatprep.subr.bf16.mxu0 0
        %575 = vmatpush1.bf16.msra.mxu0 0
        %576 = vmatprep.subr.bf16.mxu0 0
        %577 = vmatpush1.bf16.msra.mxu0 0
        %578 = vmatprep.subr.bf16.mxu0 0
        %579 = vmatpush1.bf16.msra.mxu0 0
        %580 = vmatprep.subr.bf16.mxu0 0
        %581 = vmatpush1.bf16.msra.mxu0 0
        %582 = vmatprep.subr.bf16.mxu0 0
        %583 = vmatpush1.bf16.msra.mxu0 0
        %584 = vmatprep.mubr.bf16.mxu0 0
        %585 = vmatmul.mubr.bf16.gmra.mrb[0].mxu0 %v457
        %v586 = vpop.f32.mrb[0].mxu0
        %v587 = vadd.f32 %v282, %v586
        %v588 = vpop.f32.mrb[0].mxu0
        %v589 = vpop.f32.mrb[0].mxu0
        %v590 = vadd.f32 %v282, %v589
        %v591 = vpop.f32.mrb[0].mxu0
        %592 = vmatprep.mubr.bf16.mxu0 0
        %593 = vmatmul.mubr.bf16.gmra.mrb[0].mxu0 %v460
        %v594 = vpop.f32.mrb[0].mxu0
        %v595 = vadd.f32 %v282, %v594
        %v596 = vpop.f32.mrb[0].mxu0
        %v597 = vpop.f32.mrb[0].mxu0
        %v598 = vadd.f32 %v282, %v597
        %v599 = vpop.f32.mrb[0].mxu0
        %600 = vmatprep.mubr.bf16.mxu0 0
        %601 = vmatmul.mubr.bf16.gmra.mrb[0].mxu0 %v463
        %v602 = vpop.f32.mrb[0].mxu0
        %v603 = vadd.f32 %v282, %v602
        %v604 = vpop.f32.mrb[0].mxu0
        %v605 = vpop.f32.mrb[0].mxu0
        %v606 = vadd.f32 %v282, %v605
        %v607 = vpop.f32.mrb[0].mxu0
        %608 = vmatprep.mubr.bf16.mxu0 0
        %609 = vmatmul.mubr.bf16.gmra.mrb[0].mxu0 %v466
        %v610 = vpop.f32.mrb[0].mxu0
        %v611 = vadd.f32 %v282, %v610
        %v612 = vpop.f32.mrb[0].mxu0
        %v613 = vpop.f32.mrb[0].mxu0
        %v614 = vadd.f32 %v282, %v613
        %v615 = vpop.f32.mrb[0].mxu0
        %616 = vmatprep.mubr.bf16.mxu0 0
        %617 = vmatmul.mubr.bf16.gmra.mrb[0].mxu0 %v469
        %v618 = vpop.f32.mrb[0].mxu0
        %v619 = vadd.f32 %v282, %v618
        %v620 = vpop.f32.mrb[0].mxu0
        %v621 = vpop.f32.mrb[0].mxu0
        %v622 = vadd.f32 %v282, %v621
        %v623 = vpop.f32.mrb[0].mxu0
        %624 = vmatprep.mubr.bf16.mxu0 0
        %625 = vmatmul.mubr.bf16.gmra.mrb[0].mxu0 %v472
        %v626 = vpop.f32.mrb[0].mxu0
        %v627 = vadd.f32 %v282, %v626
        %v628 = vpop.f32.mrb[0].mxu0
        %v629 = vpop.f32.mrb[0].mxu0
        %v630 = vadd.f32 %v282, %v629
        %v631 = vpop.f32.mrb[0].mxu0
        %632 = vmatprep.mubr.bf16.mxu0 0
        %633 = vmatmul.mubr.bf16.gmra.mrb[0].mxu0 %v475
        %v634 = vpop.f32.mrb[0].mxu0
        %v635 = vadd.f32 %v282, %v634
        %v636 = vpop.f32.mrb[0].mxu0
        %v637 = vpop.f32.mrb[0].mxu0
        %v638 = vadd.f32 %v282, %v637
        %v639 = vpop.f32.mrb[0].mxu0
        %640 = vmatprep.mubr.bf16.mxu0 0
        %641 = vmatmul.mubr.bf16.gmra.mrb[0].mxu0 %v478
        %v642 = vpop.f32.mrb[0].mxu0
        %v643 = vadd.f32 %v282, %v642
        %v644 = vpop.f32.mrb[0].mxu0
        %v645 = vpop.f32.mrb[0].mxu0
        %v646 = vadd.f32 %v282, %v645
        %v647 = vpop.f32.mrb[0].mxu0
        %648 = vmatprep.mubr.bf16.mxu0 0
        %649 = vmatmul.mubr.bf16.gmra.mrb[0].mxu0 %v481
        %v650 = vpop.f32.mrb[0].mxu0
        %v651 = vadd.f32 %v282, %v650
        %v652 = vpop.f32.mrb[0].mxu0
        %v653 = vpop.f32.mrb[0].mxu0
        %v654 = vadd.f32 %v282, %v653
        %v655 = vpop.f32.mrb[0].mxu0
        %656 = vmatprep.mubr.bf16.mxu0 0
        %657 = vmatmul.mubr.bf16.gmra.mrb[0].mxu0 %v484
        %v658 = vpop.f32.mrb[0].mxu0
        %v659 = vadd.f32 %v282, %v658
        %v660 = vpop.f32.mrb[0].mxu0
        %v661 = vpop.f32.mrb[0].mxu0
        %v662 = vadd.f32 %v282, %v661
        %v663 = vpop.f32.mrb[0].mxu0
        %664 = vmatprep.mubr.bf16.mxu0 0
        %665 = vmatmul.mubr.bf16.gmra.mrb[0].mxu0 %v487
        %v666 = vpop.f32.mrb[0].mxu0
        %v667 = vadd.f32 %v282, %v666
        %v668 = vpop.f32.mrb[0].mxu0
        %v669 = vpop.f32.mrb[0].mxu0
        %v670 = vadd.f32 %v282, %v669
        %v671 = vpop.f32.mrb[0].mxu0
        %672 = vmatprep.mubr.bf16.mxu0 0
        %673 = vmatmul.mubr.bf16.gmra.mrb[0].mxu0 %v490
        %v674 = vpop.f32.mrb[0].mxu0
        %v675 = vadd.f32 %v282, %v674
        %v676 = vpop.f32.mrb[0].mxu0
        %v677 = vpop.f32.mrb[0].mxu0
        %v678 = vadd.f32 %v282, %v677
        %v679 = vpop.f32.mrb[0].mxu0
        %680 = vmatprep.mubr.bf16.mxu0 0
        %681 = vmatmul.mubr.bf16.gmra.mrb[0].mxu0 %v493
        %v682 = vpop.f32.mrb[0].mxu0
        %v683 = vadd.f32 %v282, %v682
        %v684 = vpop.f32.mrb[0].mxu0
        %v685 = vpop.f32.mrb[0].mxu0
        %v686 = vadd.f32 %v282, %v685
        %v687 = vpop.f32.mrb[0].mxu0
        %688 = vmatprep.mubr.bf16.mxu0 0
        %689 = vmatmul.mubr.bf16.gmra.mrb[0].mxu0 %v496
        %v690 = vpop.f32.mrb[0].mxu0
        %v691 = vadd.f32 %v282, %v690
        %v692 = vpop.f32.mrb[0].mxu0
        %v693 = vpop.f32.mrb[0].mxu0
        %v694 = vadd.f32 %v282, %v693
        %v695 = vpop.f32.mrb[0].mxu0
        %696 = vmatprep.mubr.bf16.mxu0 0
        %697 = vmatmul.mubr.bf16.gmra.mrb[0].mxu0 %v499
        %v698 = vpop.f32.mrb[0].mxu0
        %v699 = vadd.f32 %v282, %v698
        %v700 = vpop.f32.mrb[0].mxu0
        %v701 = vpop.f32.mrb[0].mxu0
        %v702 = vadd.f32 %v282, %v701
        %v703 = vpop.f32.mrb[0].mxu0
        %704 = vmatprep.mubr.bf16.mxu0 0
        %705 = vmatmul.mubr.bf16.gmra.mrb[0].mxu0 %v502
        %v706 = vpop.f32.mrb[0].mxu0
        %v707 = vadd.f32 %v282, %v706
        %v708 = vpop.f32.mrb[0].mxu0
        %v709 = vpop.f32.mrb[0].mxu0
        %v710 = vadd.f32 %v282, %v709
        %v711 = vpop.f32.mrb[0].mxu0
        %712 = vmatprep.mubr.bf16.mxu0 0
        %713 = vmatmul.mubr.bf16.gmra.mrb[0].mxu0 %v505
        %v714 = vpop.f32.mrb[0].mxu0
        %v715 = vadd.f32 %v282, %v714
        %v716 = vpop.f32.mrb[0].mxu0
        %v717 = vpop.f32.mrb[0].mxu0
        %v718 = vadd.f32 %v282, %v717
        %v719 = vpop.f32.mrb[0].mxu0
        %720 = vmatprep.mubr.bf16.mxu0 0
        %721 = vmatmul.mubr.bf16.gmra.mrb[0].mxu0 %v508
        %v722 = vpop.f32.mrb[0].mxu0
        %v723 = vadd.f32 %v282, %v722
        %v724 = vpop.f32.mrb[0].mxu0
        %v725 = vpop.f32.mrb[0].mxu0
        %v726 = vadd.f32 %v282, %v725
        %v727 = vpop.f32.mrb[0].mxu0
        %728 = vmatprep.mubr.bf16.mxu0 0
        %729 = vmatmul.mubr.bf16.gmra.mrb[0].mxu0 %v511
        %v730 = vpop.f32.mrb[0].mxu0
        %v731 = vadd.f32 %v282, %v730
        %v732 = vpop.f32.mrb[0].mxu0
        %v733 = vpop.f32.mrb[0].mxu0
        %v734 = vadd.f32 %v282, %v733
        %v735 = vpop.f32.mrb[0].mxu0
        %736 = vmatprep.mubr.bf16.mxu0 0
        %737 = vmatmul.mubr.bf16.gmra.mrb[0].mxu0 %v514
        %v738 = vpop.f32.mrb[0].mxu0
        %v739 = vadd.f32 %v282, %v738
        %v740 = vpop.f32.mrb[0].mxu0
        %v741 = vpop.f32.mrb[0].mxu0
        %v742 = vadd.f32 %v282, %v741
        %v743 = vpop.f32.mrb[0].mxu0
        %744 = vmatprep.mubr.bf16.mxu0 0
        %745 = vmatmul.mubr.bf16.gmra.mrb[0].mxu0 %v517
        %v746 = vpop.f32.mrb[0].mxu0
        %v747 = vadd.f32 %v282, %v746
        %v748 = vpop.f32.mrb[0].mxu0
        %v749 = vpop.f32.mrb[0].mxu0
        %v750 = vadd.f32 %v282, %v749
        %v751 = vpop.f32.mrb[0].mxu0
        %752 = vmatprep.mubr.bf16.mxu0 0
        %753 = vmatmul.mubr.bf16.gmra.mrb[0].mxu0 %v520
        %v754 = vpop.f32.mrb[0].mxu0
        %v755 = vadd.f32 %v282, %v754
        %v756 = vpop.f32.mrb[0].mxu0
        %v757 = vpop.f32.mrb[0].mxu0
        %v758 = vadd.f32 %v282, %v757
        %v759 = vpop.f32.mrb[0].mxu0
        %760 = vmatprep.mubr.bf16.mxu0 0
        %761 = vmatmul.mubr.bf16.gmra.mrb[0].mxu0 %v523
        %v762 = vpop.f32.mrb[0].mxu0
        %v763 = vadd.f32 %v282, %v762
        %v764 = vpop.f32.mrb[0].mxu0
        %v765 = vpop.f32.mrb[0].mxu0
        %v766 = vadd.f32 %v282, %v765
        %v767 = vpop.f32.mrb[0].mxu0
        %768 = vmatprep.mubr.bf16.mxu0 0
        %769 = vmatmul.mubr.bf16.gmra.mrb[0].mxu0 %v526
        %v770 = vpop.f32.mrb[0].mxu0
        %v771 = vadd.f32 %v282, %v770
        %v772 = vpop.f32.mrb[0].mxu0
        %v773 = vpop.f32.mrb[0].mxu0
        %v774 = vadd.f32 %v282, %v773
        %v775 = vpop.f32.mrb[0].mxu0
        %776 = vmatprep.mubr.bf16.mxu0 0
        %777 = vmatmul.mubr.bf16.gmra.mrb[0].mxu0 %v529
        %v778 = vpop.f32.mrb[0].mxu0
        %v779 = vadd.f32 %v282, %v778
        %v780 = vpop.f32.mrb[0].mxu0
        %v781 = vpop.f32.mrb[0].mxu0
        %v782 = vadd.f32 %v282, %v781
        %v783 = vpop.f32.mrb[0].mxu0
        %784 = vmatprep.mubr.bf16.mxu0 0
        %785 = vmatmul.mubr.bf16.gmra.mrb[0].mxu0 %v532
        %v786 = vpop.f32.mrb[0].mxu0
        %v787 = vadd.f32 %v282, %v786
        %v788 = vpop.f32.mrb[0].mxu0
        %v789 = vpop.f32.mrb[0].mxu0
        %v790 = vadd.f32 %v282, %v789
        %v791 = vpop.f32.mrb[0].mxu0
        %792 = vmatprep.mubr.bf16.mxu0 0
        %793 = vmatmul.mubr.bf16.gmra.mrb[0].mxu0 %v535
        %v794 = vpop.f32.mrb[0].mxu0
        %v795 = vadd.f32 %v282, %v794
        %v796 = vpop.f32.mrb[0].mxu0
        %v797 = vpop.f32.mrb[0].mxu0
        %v798 = vadd.f32 %v282, %v797
        %v799 = vpop.f32.mrb[0].mxu0
        %800 = vmatprep.mubr.bf16.mxu0 0
        %801 = vmatmul.mubr.bf16.gmra.mrb[0].mxu0 %v538
        %v802 = vpop.f32.mrb[0].mxu0
        %v803 = vadd.f32 %v282, %v802
        %v804 = vpop.f32.mrb[0].mxu0
        %v805 = vpop.f32.mrb[0].mxu0
        %v806 = vadd.f32 %v282, %v805
        %v807 = vpop.f32.mrb[0].mxu0
        %808 = vmatprep.mubr.bf16.mxu0 0
        %809 = vmatmul.mubr.bf16.gmra.mrb[0].mxu0 %v541
        %v810 = vpop.f32.mrb[0].mxu0
        %v811 = vadd.f32 %v282, %v810
        %v812 = vpop.f32.mrb[0].mxu0
        %v813 = vpop.f32.mrb[0].mxu0
        %v814 = vadd.f32 %v282, %v813
        %v815 = vpop.f32.mrb[0].mxu0
        %816 = vmatprep.mubr.bf16.mxu0 0
        %817 = vmatmul.mubr.bf16.gmra.mrb[0].mxu0 %v544
        %v818 = vpop.f32.mrb[0].mxu0
        %v819 = vadd.f32 %v282, %v818
        %v820 = vpop.f32.mrb[0].mxu0
        %v821 = vpop.f32.mrb[0].mxu0
        %v822 = vadd.f32 %v282, %v821
        %v823 = vpop.f32.mrb[0].mxu0
        %824 = vmatprep.mubr.bf16.mxu0 0
        %825 = vmatmul.mubr.bf16.gmra.mrb[0].mxu0 %v547
        %v826 = vpop.f32.mrb[0].mxu0
        %v827 = vadd.f32 %v282, %v826
        %v828 = vpop.f32.mrb[0].mxu0
        %v829 = vpop.f32.mrb[0].mxu0
        %v830 = vadd.f32 %v282, %v829
        %v831 = vpop.f32.mrb[0].mxu0
        %832 = vmatprep.mubr.bf16.mxu0 0
        %833 = vmatmul.mubr.bf16.gmra.mrb[0].mxu0 %v550
        %v834 = vpop.f32.mrb[0].mxu0
        %v835 = vadd.f32 %v282, %v834
        %v836 = vpop.f32.mrb[0].mxu0
        %v837 = vpop.f32.mrb[0].mxu0
        %v838 = vadd.f32 %v282, %v837
        %v839 = vpop.f32.mrb[0].mxu0
        %840 = vdwg.mxu0
        %v841 = vmax.f32 %v587, 0.0
        %v842 = vmax.f32 %v590, 0.0
        %v843 = vmax.f32 %v595, 0.0
        %v844 = vmax.f32 %v598, 0.0
        %v845 = vmax.f32 %v603, 0.0
        %v846 = vmax.f32 %v606, 0.0
        %v847 = vmax.f32 %v611, 0.0
        %v848 = vmax.f32 %v614, 0.0
        %v849 = vmax.f32 %v619, 0.0
        %v850 = vmax.f32 %v622, 0.0
        %v851 = vmax.f32 %v627, 0.0
        %v852 = vmax.f32 %v630, 0.0
        %v853 = vmax.f32 %v635, 0.0
        %v854 = vmax.f32 %v638, 0.0
        %v855 = vmax.f32 %v643, 0.0
        %v856 = vmax.f32 %v646, 0.0
        %v857 = vmax.f32 %v651, 0.0
        %v858 = vmax.f32 %v654, 0.0
        %v859 = vmax.f32 %v659, 0.0
        %v860 = vmax.f32 %v662, 0.0
        %v861 = vmax.f32 %v667, 0.0
        %v862 = vmax.f32 %v670, 0.0
        %v863 = vmax.f32 %v675, 0.0
        %v864 = vmax.f32 %v678, 0.0
        %v865 = vmax.f32 %v683, 0.0
        %v866 = vmax.f32 %v686, 0.0
        %v867 = vmax.f32 %v691, 0.0
        %v868 = vmax.f32 %v694, 0.0
        %v869 = vmax.f32 %v699, 0.0
        %v870 = vmax.f32 %v702, 0.0
        %v871 = vmax.f32 %v707, 0.0
        %v872 = vmax.f32 %v710, 0.0
        %v873 = vmax.f32 %v715, 0.0
        %v874 = vmax.f32 %v718, 0.0
        %v875 = vmax.f32 %v723, 0.0
        %v876 = vmax.f32 %v726, 0.0
        %v877 = vmax.f32 %v731, 0.0
        %v878 = vmax.f32 %v734, 0.0
        %v879 = vmax.f32 %v739, 0.0
        %v880 = vmax.f32 %v742, 0.0
        %v881 = vmax.f32 %v747, 0.0
        %v882 = vmax.f32 %v750, 0.0
        %v883 = vmax.f32 %v755, 0.0
        %v884 = vmax.f32 %v758, 0.0
        %v885 = vmax.f32 %v763, 0.0
        %v886 = vmax.f32 %v766, 0.0
        %v887 = vmax.f32 %v771, 0.0
        %v888 = vmax.f32 %v774, 0.0
        %v889 = vmax.f32 %v779, 0.0
        %v890 = vmax.f32 %v782, 0.0
        %v891 = vmax.f32 %v787, 0.0
        %v892 = vmax.f32 %v790, 0.0
        %v893 = vmax.f32 %v795, 0.0
        %v894 = vmax.f32 %v798, 0.0
        %v895 = vmax.f32 %v803, 0.0
        %v896 = vmax.f32 %v806, 0.0
        %v897 = vmax.f32 %v811, 0.0
        %v898 = vmax.f32 %v814, 0.0
        %v899 = vmax.f32 %v819, 0.0
        %v900 = vmax.f32 %v822, 0.0
        %v901 = vmax.f32 %v827, 0.0
        %v902 = vmax.f32 %v830, 0.0
        %v903 = vmax.f32 %v835, 0.0
        %v904 = vmax.f32 %v838, 0.0
        %v905 = vmin.f32 %v841, 6.0
        %v906 = vmin.f32 %v842, 6.0
        %v907 = vmin.f32 %v843, 6.0
        %v908 = vmin.f32 %v844, 6.0
        %v909 = vmin.f32 %v845, 6.0
        %v910 = vmin.f32 %v846, 6.0
        %v911 = vmin.f32 %v847, 6.0
        %v912 = vmin.f32 %v848, 6.0
        %v913 = vmin.f32 %v849, 6.0
        %v914 = vmin.f32 %v850, 6.0
        %v915 = vmin.f32 %v851, 6.0
        %v916 = vmin.f32 %v852, 6.0
        %v917 = vmin.f32 %v853, 6.0
        %v918 = vmin.f32 %v854, 6.0
        %v919 = vmin.f32 %v855, 6.0
        %v920 = vmin.f32 %v856, 6.0
        %v921 = vmin.f32 %v857, 6.0
        %v922 = vmin.f32 %v858, 6.0
        %v923 = vmin.f32 %v859, 6.0
        %v924 = vmin.f32 %v860, 6.0
        %v925 = vmin.f32 %v861, 6.0
        %v926 = vmin.f32 %v862, 6.0
        %v927 = vmin.f32 %v863, 6.0
        %v928 = vmin.f32 %v864, 6.0
        %v929 = vmin.f32 %v865, 6.0
        %v930 = vmin.f32 %v866, 6.0
        %v931 = vmin.f32 %v867, 6.0
        %v932 = vmin.f32 %v868, 6.0
        %v933 = vmin.f32 %v869, 6.0
        %v934 = vmin.f32 %v870, 6.0
        %v935 = vmin.f32 %v871, 6.0
        %v936 = vmin.f32 %v872, 6.0
        %v937 = vmin.f32 %v873, 6.0
        %v938 = vmin.f32 %v874, 6.0
        %v939 = vmin.f32 %v875, 6.0
        %v940 = vmin.f32 %v876, 6.0
        %v941 = vmin.f32 %v877, 6.0
        %v942 = vmin.f32 %v878, 6.0
        %v943 = vmin.f32 %v879, 6.0
        %v944 = vmin.f32 %v880, 6.0
        %v945 = vmin.f32 %v881, 6.0
        %v946 = vmin.f32 %v882, 6.0
        %v947 = vmin.f32 %v883, 6.0
        %v948 = vmin.f32 %v884, 6.0
        %v949 = vmin.f32 %v885, 6.0
        %v950 = vmin.f32 %v886, 6.0
        %v951 = vmin.f32 %v887, 6.0
        %v952 = vmin.f32 %v888, 6.0
        %v953 = vmin.f32 %v889, 6.0
        %v954 = vmin.f32 %v890, 6.0
        %v955 = vmin.f32 %v891, 6.0
        %v956 = vmin.f32 %v892, 6.0
        %v957 = vmin.f32 %v893, 6.0
        %v958 = vmin.f32 %v894, 6.0
        %v959 = vmin.f32 %v895, 6.0
        %v960 = vmin.f32 %v896, 6.0
        %v961 = vmin.f32 %v897, 6.0
        %v962 = vmin.f32 %v898, 6.0
        %v963 = vmin.f32 %v899, 6.0
        %v964 = vmin.f32 %v900, 6.0
        %v965 = vmin.f32 %v901, 6.0
        %v966 = vmin.f32 %v902, 6.0
        %v967 = vmin.f32 %v903, 6.0
        %v968 = vmin.f32 %v904, 6.0
        %v969 = vpack.c.bf16 %v906, %v905
        %v970 = vpack.c.bf16 %v908, %v907
        %v971 = vpack.c.bf16 %v910, %v909
        %v972 = vpack.c.bf16 %v912, %v911
        %v973 = vpack.c.bf16 %v914, %v913
        %v974 = vpack.c.bf16 %v916, %v915
        %v975 = vpack.c.bf16 %v918, %v917
        %v976 = vpack.c.bf16 %v920, %v919
        %v977 = vpack.c.bf16 %v922, %v921
        %v978 = vpack.c.bf16 %v924, %v923
        %v979 = vpack.c.bf16 %v926, %v925
        %v980 = vpack.c.bf16 %v928, %v927
        %v981 = vpack.c.bf16 %v930, %v929
        %v982 = vpack.c.bf16 %v932, %v931
        %v983 = vpack.c.bf16 %v934, %v933
        %v984 = vpack.c.bf16 %v936, %v935
        %v985 = vpack.c.bf16 %v938, %v937
        %v986 = vpack.c.bf16 %v940, %v939
        %v987 = vpack.c.bf16 %v942, %v941
        %v988 = vpack.c.bf16 %v944, %v943
        %v989 = vpack.c.bf16 %v946, %v945
        %v990 = vpack.c.bf16 %v948, %v947
        %v991 = vpack.c.bf16 %v950, %v949
        %v992 = vpack.c.bf16 %v952, %v951
        %v993 = vpack.c.bf16 %v954, %v953
        %v994 = vpack.c.bf16 %v956, %v955
        %v995 = vpack.c.bf16 %v958, %v957
        %v996 = vpack.c.bf16 %v960, %v959
        %v997 = vpack.c.bf16 %v962, %v961
        %v998 = vpack.c.bf16 %v964, %v963
        %v999 = vpack.c.bf16 %v966, %v965
        %v1000 = vpack.c.bf16 %v968, %v967
        %v1001 = vlaneseq
        %v1002 = vshrl.u32 %v1001, 7
        %v1003 = vsub.s32 1, %v1002
        %v1004 = vrot.slane %v214, %v1003
        %v1009 = vunpack.c.l.b16 %v202
        %v1010 = vunpack.c.l.b16 %v203
        %v1011 = vunpack.c.l.b16 %v204
        %v1012 = vunpack.c.l.b16 %v205
        %v1013 = vpack.c.b16 %v1010, %v1009
        %v1014 = vpack.c.b16 %v1012, %v1011
        %v1018 = vsel %vm455, %v969, 0
        %v1021 = vsel %vm455, %v970, 0
        %v1024 = vsel %vm455, %v971, 0
        %v1027 = vsel %vm455, %v972, 0
        %v1030 = vsel %vm455, %v973, 0
        %v1033 = vsel %vm455, %v974, 0
        %v1036 = vsel %vm455, %v975, 0
        %v1039 = vsel %vm455, %v976, 0
        %v1042 = vsel %vm455, %v977, 0
        %v1045 = vsel %vm455, %v978, 0
        %v1048 = vsel %vm455, %v979, 0
        %v1051 = vsel %vm455, %v980, 0
        %v1054 = vsel %vm455, %v981, 0
        %v1057 = vsel %vm455, %v982, 0
        %v1060 = vsel %vm455, %v983, 0
        %v1063 = vsel %vm455, %v984, 0
        %v1066 = vsel %vm455, %v985, 0
        %v1069 = vsel %vm455, %v986, 0
        %v1072 = vsel %vm455, %v987, 0
        %v1075 = vsel %vm455, %v988, 0
        %v1078 = vsel %vm455, %v989, 0
        %v1081 = vsel %vm455, %v990, 0
        %v1084 = vsel %vm455, %v991, 0
        %v1087 = vsel %vm455, %v992, 0
        %v1090 = vsel %vm455, %v993, 0
        %v1093 = vsel %vm455, %v994, 0
        %v1096 = vsel %vm455, %v995, 0
        %v1099 = vsel %vm455, %v996, 0
        %v1102 = vsel %vm455, %v997, 0
        %v1105 = vsel %vm455, %v998, 0
        %v1108 = vsel %vm455, %v999, 0
        %v1111 = vsel %vm455, %v1000, 0
        %1113 = vmatprep.subr.bf16.mxu0 0
        %1114 = vmatpush1.bf16.msra.mxu0 %v1013
        %1115 = vmatprep.subr.bf16.mxu0 0
        %1116 = vmatpush1.bf16.msra.mxu0 %v1014
        %1117 = vmatprep.subr.bf16.mxu0 0
        %1118 = vmatpush1.bf16.msra.mxu0 0
        %1119 = vmatprep.subr.bf16.mxu0 0
        %1120 = vmatpush1.bf16.msra.mxu0 0
        %1121 = vmatprep.subr.bf16.mxu0 0
        %1122 = vmatpush1.bf16.msra.mxu0 0
        %1123 = vmatprep.subr.bf16.mxu0 0
        %1124 = vmatpush1.bf16.msra.mxu0 0
        %1125 = vmatprep.subr.bf16.mxu0 0
        %1126 = vmatpush1.bf16.msra.mxu0 0
        %1127 = vmatprep.subr.bf16.mxu0 0
        %1128 = vmatpush1.bf16.msra.mxu0 0
        %1129 = vmatprep.subr.bf16.mxu0 0
        %1130 = vmatpush1.bf16.msra.mxu0 0
        %1131 = vmatprep.subr.bf16.mxu0 0
        %1132 = vmatpush1.bf16.msra.mxu0 0
        %1133 = vmatprep.subr.bf16.mxu0 0
        %1134 = vmatpush1.bf16.msra.mxu0 0
        %1135 = vmatprep.subr.bf16.mxu0 0
        %1136 = vmatpush1.bf16.msra.mxu0 0
        %1137 = vmatprep.subr.bf16.mxu0 0
        %1138 = vmatpush1.bf16.msra.mxu0 0
        %1139 = vmatprep.subr.bf16.mxu0 0
        %1140 = vmatpush1.bf16.msra.mxu0 0
        %1141 = vmatprep.subr.bf16.mxu0 0
        %1142 = vmatpush1.bf16.msra.mxu0 0
        %1143 = vmatprep.subr.bf16.mxu0 0
        %1144 = vmatpush1.bf16.msra.mxu0 0
        %1145 = vmatprep.mubr.bf16.mxu0 0
        %1146 = vmatmul.mubr.bf16.gmra.mrb[0].mxu0 %v1018
        %v1147 = vpop.f32.mrb[0].mxu0
        %v1148 = vadd.f32 %v1004, %v1147
        %v1149 = vpop.f32.mrb[0].mxu0
        %v1150 = vpop.f32.mrb[0].mxu0
        %v1151 = vadd.f32 %v1004, %v1150
        %v1152 = vpop.f32.mrb[0].mxu0
        %1153 = vmatprep.mubr.bf16.mxu0 0
        %1154 = vmatmul.mubr.bf16.gmra.mrb[0].mxu0 %v1021
        %v1155 = vpop.f32.mrb[0].mxu0
        %v1156 = vadd.f32 %v1004, %v1155
        %v1157 = vpop.f32.mrb[0].mxu0
        %v1158 = vpop.f32.mrb[0].mxu0
        %v1159 = vadd.f32 %v1004, %v1158
        %v1160 = vpop.f32.mrb[0].mxu0
        %1161 = vmatprep.mubr.bf16.mxu0 0
        %1162 = vmatmul.mubr.bf16.gmra.mrb[0].mxu0 %v1024
        %v1163 = vpop.f32.mrb[0].mxu0
        %v1164 = vadd.f32 %v1004, %v1163
        %v1165 = vpop.f32.mrb[0].mxu0
        %v1166 = vpop.f32.mrb[0].mxu0
        %v1167 = vadd.f32 %v1004, %v1166
        %v1168 = vpop.f32.mrb[0].mxu0
        %1169 = vmatprep.mubr.bf16.mxu0 0
        %1170 = vmatmul.mubr.bf16.gmra.mrb[0].mxu0 %v1027
        %v1171 = vpop.f32.mrb[0].mxu0
        %v1172 = vadd.f32 %v1004, %v1171
        %v1173 = vpop.f32.mrb[0].mxu0
        %v1174 = vpop.f32.mrb[0].mxu0
        %v1175 = vadd.f32 %v1004, %v1174
        %v1176 = vpop.f32.mrb[0].mxu0
        %1177 = vmatprep.mubr.bf16.mxu0 0
        %1178 = vmatmul.mubr.bf16.gmra.mrb[0].mxu0 %v1030
        %v1179 = vpop.f32.mrb[0].mxu0
        %v1180 = vadd.f32 %v1004, %v1179
        %v1181 = vpop.f32.mrb[0].mxu0
        %v1182 = vpop.f32.mrb[0].mxu0
        %v1183 = vadd.f32 %v1004, %v1182
        %v1184 = vpop.f32.mrb[0].mxu0
        %1185 = vmatprep.mubr.bf16.mxu0 0
        %1186 = vmatmul.mubr.bf16.gmra.mrb[0].mxu0 %v1033
        %v1187 = vpop.f32.mrb[0].mxu0
        %v1188 = vadd.f32 %v1004, %v1187
        %v1189 = vpop.f32.mrb[0].mxu0
        %v1190 = vpop.f32.mrb[0].mxu0
        %v1191 = vadd.f32 %v1004, %v1190
        %v1192 = vpop.f32.mrb[0].mxu0
        %1193 = vmatprep.mubr.bf16.mxu0 0
        %1194 = vmatmul.mubr.bf16.gmra.mrb[0].mxu0 %v1036
        %v1195 = vpop.f32.mrb[0].mxu0
        %v1196 = vadd.f32 %v1004, %v1195
        %v1197 = vpop.f32.mrb[0].mxu0
        %v1198 = vpop.f32.mrb[0].mxu0
        %v1199 = vadd.f32 %v1004, %v1198
        %v1200 = vpop.f32.mrb[0].mxu0
        %1201 = vmatprep.mubr.bf16.mxu0 0
        %1202 = vmatmul.mubr.bf16.gmra.mrb[0].mxu0 %v1039
        %v1203 = vpop.f32.mrb[0].mxu0
        %v1204 = vadd.f32 %v1004, %v1203
        %v1205 = vpop.f32.mrb[0].mxu0
        %v1206 = vpop.f32.mrb[0].mxu0
        %v1207 = vadd.f32 %v1004, %v1206
        %v1208 = vpop.f32.mrb[0].mxu0
        %1209 = vmatprep.mubr.bf16.mxu0 0
        %1210 = vmatmul.mubr.bf16.gmra.mrb[0].mxu0 %v1042
        %v1211 = vpop.f32.mrb[0].mxu0
        %v1212 = vadd.f32 %v1004, %v1211
        %v1213 = vpop.f32.mrb[0].mxu0
        %v1214 = vpop.f32.mrb[0].mxu0
        %v1215 = vadd.f32 %v1004, %v1214
        %v1216 = vpop.f32.mrb[0].mxu0
        %1217 = vmatprep.mubr.bf16.mxu0 0
        %1218 = vmatmul.mubr.bf16.gmra.mrb[0].mxu0 %v1045
        %v1219 = vpop.f32.mrb[0].mxu0
        %v1220 = vadd.f32 %v1004, %v1219
        %v1221 = vpop.f32.mrb[0].mxu0
        %v1222 = vpop.f32.mrb[0].mxu0
        %v1223 = vadd.f32 %v1004, %v1222
        %v1224 = vpop.f32.mrb[0].mxu0
        %1225 = vmatprep.mubr.bf16.mxu0 0
        %1226 = vmatmul.mubr.bf16.gmra.mrb[0].mxu0 %v1048
        %v1227 = vpop.f32.mrb[0].mxu0
        %v1228 = vadd.f32 %v1004, %v1227
        %v1229 = vpop.f32.mrb[0].mxu0
        %v1230 = vpop.f32.mrb[0].mxu0
        %v1231 = vadd.f32 %v1004, %v1230
        %v1232 = vpop.f32.mrb[0].mxu0
        %1233 = vmatprep.mubr.bf16.mxu0 0
        %1234 = vmatmul.mubr.bf16.gmra.mrb[0].mxu0 %v1051
        %v1235 = vpop.f32.mrb[0].mxu0
        %v1236 = vadd.f32 %v1004, %v1235
        %v1237 = vpop.f32.mrb[0].mxu0
        %v1238 = vpop.f32.mrb[0].mxu0
        %v1239 = vadd.f32 %v1004, %v1238
        %v1240 = vpop.f32.mrb[0].mxu0
        %1241 = vmatprep.mubr.bf16.mxu0 0
        %1242 = vmatmul.mubr.bf16.gmra.mrb[0].mxu0 %v1054
        %v1243 = vpop.f32.mrb[0].mxu0
        %v1244 = vadd.f32 %v1004, %v1243
        %v1245 = vpop.f32.mrb[0].mxu0
        %v1246 = vpop.f32.mrb[0].mxu0
        %v1247 = vadd.f32 %v1004, %v1246
        %v1248 = vpop.f32.mrb[0].mxu0
        %1249 = vmatprep.mubr.bf16.mxu0 0
        %1250 = vmatmul.mubr.bf16.gmra.mrb[0].mxu0 %v1057
        %v1251 = vpop.f32.mrb[0].mxu0
        %v1252 = vadd.f32 %v1004, %v1251
        %v1253 = vpop.f32.mrb[0].mxu0
        %v1254 = vpop.f32.mrb[0].mxu0
        %v1255 = vadd.f32 %v1004, %v1254
        %v1256 = vpop.f32.mrb[0].mxu0
        %1257 = vmatprep.mubr.bf16.mxu0 0
        %1258 = vmatmul.mubr.bf16.gmra.mrb[0].mxu0 %v1060
        %v1259 = vpop.f32.mrb[0].mxu0
        %v1260 = vadd.f32 %v1004, %v1259
        %v1261 = vpop.f32.mrb[0].mxu0
        %v1262 = vpop.f32.mrb[0].mxu0
        %v1263 = vadd.f32 %v1004, %v1262
        %v1264 = vpop.f32.mrb[0].mxu0
        %1265 = vmatprep.mubr.bf16.mxu0 0
        %1266 = vmatmul.mubr.bf16.gmra.mrb[0].mxu0 %v1063
        %v1267 = vpop.f32.mrb[0].mxu0
        %v1268 = vadd.f32 %v1004, %v1267
        %v1269 = vpop.f32.mrb[0].mxu0
        %v1270 = vpop.f32.mrb[0].mxu0
        %v1271 = vadd.f32 %v1004, %v1270
        %v1272 = vpop.f32.mrb[0].mxu0
        %1273 = vmatprep.mubr.bf16.mxu0 0
        %1274 = vmatmul.mubr.bf16.gmra.mrb[0].mxu0 %v1066
        %v1275 = vpop.f32.mrb[0].mxu0
        %v1276 = vadd.f32 %v1004, %v1275
        %v1277 = vpop.f32.mrb[0].mxu0
        %v1278 = vpop.f32.mrb[0].mxu0
        %v1279 = vadd.f32 %v1004, %v1278
        %v1280 = vpop.f32.mrb[0].mxu0
        %1281 = vmatprep.mubr.bf16.mxu0 0
        %1282 = vmatmul.mubr.bf16.gmra.mrb[0].mxu0 %v1069
        %v1283 = vpop.f32.mrb[0].mxu0
        %v1284 = vadd.f32 %v1004, %v1283
        %v1285 = vpop.f32.mrb[0].mxu0
        %v1286 = vpop.f32.mrb[0].mxu0
        %v1287 = vadd.f32 %v1004, %v1286
        %v1288 = vpop.f32.mrb[0].mxu0
        %1289 = vmatprep.mubr.bf16.mxu0 0
        %1290 = vmatmul.mubr.bf16.gmra.mrb[0].mxu0 %v1072
        %v1291 = vpop.f32.mrb[0].mxu0
        %v1292 = vadd.f32 %v1004, %v1291
        %v1293 = vpop.f32.mrb[0].mxu0
        %v1294 = vpop.f32.mrb[0].mxu0
        %v1295 = vadd.f32 %v1004, %v1294
        %v1296 = vpop.f32.mrb[0].mxu0
        %1297 = vmatprep.mubr.bf16.mxu0 0
        %1298 = vmatmul.mubr.bf16.gmra.mrb[0].mxu0 %v1075
        %v1299 = vpop.f32.mrb[0].mxu0
        %v1300 = vadd.f32 %v1004, %v1299
        %v1301 = vpop.f32.mrb[0].mxu0
        %v1302 = vpop.f32.mrb[0].mxu0
        %v1303 = vadd.f32 %v1004, %v1302
        %v1304 = vpop.f32.mrb[0].mxu0
        %1305 = vmatprep.mubr.bf16.mxu0 0
        %1306 = vmatmul.mubr.bf16.gmra.mrb[0].mxu0 %v1078
        %v1307 = vpop.f32.mrb[0].mxu0
        %v1308 = vadd.f32 %v1004, %v1307
        %v1309 = vpop.f32.mrb[0].mxu0
        %v1310 = vpop.f32.mrb[0].mxu0
        %v1311 = vadd.f32 %v1004, %v1310
        %v1312 = vpop.f32.mrb[0].mxu0
        %1313 = vmatprep.mubr.bf16.mxu0 0
        %1314 = vmatmul.mubr.bf16.gmra.mrb[0].mxu0 %v1081
        %v1315 = vpop.f32.mrb[0].mxu0
        %v1316 = vadd.f32 %v1004, %v1315
        %v1317 = vpop.f32.mrb[0].mxu0
        %v1318 = vpop.f32.mrb[0].mxu0
        %v1319 = vadd.f32 %v1004, %v1318
        %v1320 = vpop.f32.mrb[0].mxu0
        %1321 = vmatprep.mubr.bf16.mxu0 0
        %1322 = vmatmul.mubr.bf16.gmra.mrb[0].mxu0 %v1084
        %v1323 = vpop.f32.mrb[0].mxu0
        %v1324 = vadd.f32 %v1004, %v1323
        %v1325 = vpop.f32.mrb[0].mxu0
        %v1326 = vpop.f32.mrb[0].mxu0
        %v1327 = vadd.f32 %v1004, %v1326
        %v1328 = vpop.f32.mrb[0].mxu0
        %1329 = vmatprep.mubr.bf16.mxu0 0
        %1330 = vmatmul.mubr.bf16.gmra.mrb[0].mxu0 %v1087
        %v1331 = vpop.f32.mrb[0].mxu0
        %v1332 = vadd.f32 %v1004, %v1331
        %v1333 = vpop.f32.mrb[0].mxu0
        %v1334 = vpop.f32.mrb[0].mxu0
        %v1335 = vadd.f32 %v1004, %v1334
        %v1336 = vpop.f32.mrb[0].mxu0
        %1337 = vmatprep.mubr.bf16.mxu0 0
        %1338 = vmatmul.mubr.bf16.gmra.mrb[0].mxu0 %v1090
        %v1339 = vpop.f32.mrb[0].mxu0
        %v1340 = vadd.f32 %v1004, %v1339
        %v1341 = vpop.f32.mrb[0].mxu0
        %v1342 = vpop.f32.mrb[0].mxu0
        %v1343 = vadd.f32 %v1004, %v1342
        %v1344 = vpop.f32.mrb[0].mxu0
        %1345 = vmatprep.mubr.bf16.mxu0 0
        %1346 = vmatmul.mubr.bf16.gmra.mrb[0].mxu0 %v1093
        %v1347 = vpop.f32.mrb[0].mxu0
        %v1348 = vadd.f32 %v1004, %v1347
        %v1349 = vpop.f32.mrb[0].mxu0
        %v1350 = vpop.f32.mrb[0].mxu0
        %v1351 = vadd.f32 %v1004, %v1350
        %v1352 = vpop.f32.mrb[0].mxu0
        %1353 = vmatprep.mubr.bf16.mxu0 0
        %1354 = vmatmul.mubr.bf16.gmra.mrb[0].mxu0 %v1096
        %v1355 = vpop.f32.mrb[0].mxu0
        %v1356 = vadd.f32 %v1004, %v1355
        %v1357 = vpop.f32.mrb[0].mxu0
        %v1358 = vpop.f32.mrb[0].mxu0
        %v1359 = vadd.f32 %v1004, %v1358
        %v1360 = vpop.f32.mrb[0].mxu0
        %1361 = vmatprep.mubr.bf16.mxu0 0
        %1362 = vmatmul.mubr.bf16.gmra.mrb[0].mxu0 %v1099
        %v1363 = vpop.f32.mrb[0].mxu0
        %v1364 = vadd.f32 %v1004, %v1363
        %v1365 = vpop.f32.mrb[0].mxu0
        %v1366 = vpop.f32.mrb[0].mxu0
        %v1367 = vadd.f32 %v1004, %v1366
        %v1368 = vpop.f32.mrb[0].mxu0
        %1369 = vmatprep.mubr.bf16.mxu0 0
        %1370 = vmatmul.mubr.bf16.gmra.mrb[0].mxu0 %v1102
        %v1371 = vpop.f32.mrb[0].mxu0
        %v1372 = vadd.f32 %v1004, %v1371
        %v1373 = vpop.f32.mrb[0].mxu0
        %v1374 = vpop.f32.mrb[0].mxu0
        %v1375 = vadd.f32 %v1004, %v1374
        %v1376 = vpop.f32.mrb[0].mxu0
        %1377 = vmatprep.mubr.bf16.mxu0 0
        %1378 = vmatmul.mubr.bf16.gmra.mrb[0].mxu0 %v1105
        %v1379 = vpop.f32.mrb[0].mxu0
        %v1380 = vadd.f32 %v1004, %v1379
        %v1381 = vpop.f32.mrb[0].mxu0
        %v1382 = vpop.f32.mrb[0].mxu0
        %v1383 = vadd.f32 %v1004, %v1382
        %v1384 = vpop.f32.mrb[0].mxu0
        %1385 = vmatprep.mubr.bf16.mxu0 0
        %1386 = vmatmul.mubr.bf16.gmra.mrb[0].mxu0 %v1108
        %v1387 = vpop.f32.mrb[0].mxu0
        %v1388 = vadd.f32 %v1004, %v1387
        %v1389 = vpop.f32.mrb[0].mxu0
        %v1390 = vpop.f32.mrb[0].mxu0
        %v1391 = vadd.f32 %v1004, %v1390
        %v1392 = vpop.f32.mrb[0].mxu0
        %1393 = vmatprep.mubr.bf16.mxu0 0
        %1394 = vmatmul.mubr.bf16.gmra.mrb[0].mxu0 %v1111
        %v1395 = vpop.f32.mrb[0].mxu0
        %v1396 = vadd.f32 %v1004, %v1395
        %v1397 = vpop.f32.mrb[0].mxu0
        %v1398 = vpop.f32.mrb[0].mxu0
        %v1399 = vadd.f32 %v1004, %v1398
        %v1400 = vpop.f32.mrb[0].mxu0
        %1401 = vdwg.mxu0
        %v1402 = vmax.f32 %v1148, 0.0
        %v1403 = vmax.f32 %v1151, 0.0
        %v1404 = vmax.f32 %v1156, 0.0
        %v1405 = vmax.f32 %v1159, 0.0
        %v1406 = vmax.f32 %v1164, 0.0
        %v1407 = vmax.f32 %v1167, 0.0
        %v1408 = vmax.f32 %v1172, 0.0
        %v1409 = vmax.f32 %v1175, 0.0
        %v1410 = vmax.f32 %v1180, 0.0
        %v1411 = vmax.f32 %v1183, 0.0
        %v1412 = vmax.f32 %v1188, 0.0
        %v1413 = vmax.f32 %v1191, 0.0
        %v1414 = vmax.f32 %v1196, 0.0
        %v1415 = vmax.f32 %v1199, 0.0
        %v1416 = vmax.f32 %v1204, 0.0
        %v1417 = vmax.f32 %v1207, 0.0
        %v1418 = vmax.f32 %v1212, 0.0
        %v1419 = vmax.f32 %v1215, 0.0
        %v1420 = vmax.f32 %v1220, 0.0
        %v1421 = vmax.f32 %v1223, 0.0
        %v1422 = vmax.f32 %v1228, 0.0
        %v1423 = vmax.f32 %v1231, 0.0
        %v1424 = vmax.f32 %v1236, 0.0
        %v1425 = vmax.f32 %v1239, 0.0
        %v1426 = vmax.f32 %v1244, 0.0
        %v1427 = vmax.f32 %v1247, 0.0
        %v1428 = vmax.f32 %v1252, 0.0
        %v1429 = vmax.f32 %v1255, 0.0
        %v1430 = vmax.f32 %v1260, 0.0
        %v1431 = vmax.f32 %v1263, 0.0
        %v1432 = vmax.f32 %v1268, 0.0
        %v1433 = vmax.f32 %v1271, 0.0
        %v1434 = vmax.f32 %v1276, 0.0
        %v1435 = vmax.f32 %v1279, 0.0
        %v1436 = vmax.f32 %v1284, 0.0
        %v1437 = vmax.f32 %v1287, 0.0
        %v1438 = vmax.f32 %v1292, 0.0
        %v1439 = vmax.f32 %v1295, 0.0
        %v1440 = vmax.f32 %v1300, 0.0
        %v1441 = vmax.f32 %v1303, 0.0
        %v1442 = vmax.f32 %v1308, 0.0
        %v1443 = vmax.f32 %v1311, 0.0
        %v1444 = vmax.f32 %v1316, 0.0
        %v1445 = vmax.f32 %v1319, 0.0
        %v1446 = vmax.f32 %v1324, 0.0
        %v1447 = vmax.f32 %v1327, 0.0
        %v1448 = vmax.f32 %v1332, 0.0
        %v1449 = vmax.f32 %v1335, 0.0
        %v1450 = vmax.f32 %v1340, 0.0
        %v1451 = vmax.f32 %v1343, 0.0
        %v1452 = vmax.f32 %v1348, 0.0
        %v1453 = vmax.f32 %v1351, 0.0
        %v1454 = vmax.f32 %v1356, 0.0
        %v1455 = vmax.f32 %v1359, 0.0
        %v1456 = vmax.f32 %v1364, 0.0
        %v1457 = vmax.f32 %v1367, 0.0
        %v1458 = vmax.f32 %v1372, 0.0
        %v1459 = vmax.f32 %v1375, 0.0
        %v1460 = vmax.f32 %v1380, 0.0
        %v1461 = vmax.f32 %v1383, 0.0
        %v1462 = vmax.f32 %v1388, 0.0
        %v1463 = vmax.f32 %v1391, 0.0
        %v1464 = vmax.f32 %v1396, 0.0
        %v1465 = vmax.f32 %v1399, 0.0
        %v1466 = vmin.f32 %v1402, 6.0
        %v1467 = vmin.f32 %v1403, 6.0
        %v1468 = vmin.f32 %v1404, 6.0
        %v1469 = vmin.f32 %v1405, 6.0
        %v1470 = vmin.f32 %v1406, 6.0
        %v1471 = vmin.f32 %v1407, 6.0
        %v1472 = vmin.f32 %v1408, 6.0
        %v1473 = vmin.f32 %v1409, 6.0
        %v1474 = vmin.f32 %v1410, 6.0
        %v1475 = vmin.f32 %v1411, 6.0
        %v1476 = vmin.f32 %v1412, 6.0
        %v1477 = vmin.f32 %v1413, 6.0
        %v1478 = vmin.f32 %v1414, 6.0
        %v1479 = vmin.f32 %v1415, 6.0
        %v1480 = vmin.f32 %v1416, 6.0
        %v1481 = vmin.f32 %v1417, 6.0
        %v1482 = vmin.f32 %v1418, 6.0
        %v1483 = vmin.f32 %v1419, 6.0
        %v1484 = vmin.f32 %v1420, 6.0
        %v1485 = vmin.f32 %v1421, 6.0
        %v1486 = vmin.f32 %v1422, 6.0
        %v1487 = vmin.f32 %v1423, 6.0
        %v1488 = vmin.f32 %v1424, 6.0
        %v1489 = vmin.f32 %v1425, 6.0
        %v1490 = vmin.f32 %v1426, 6.0
        %v1491 = vmin.f32 %v1427, 6.0
        %v1492 = vmin.f32 %v1428, 6.0
        %v1493 = vmin.f32 %v1429, 6.0
        %v1494 = vmin.f32 %v1430, 6.0
        %v1495 = vmin.f32 %v1431, 6.0
        %v1496 = vmin.f32 %v1432, 6.0
        %v1497 = vmin.f32 %v1433, 6.0
        %v1498 = vmin.f32 %v1434, 6.0
        %v1499 = vmin.f32 %v1435, 6.0
        %v1500 = vmin.f32 %v1436, 6.0
        %v1501 = vmin.f32 %v1437, 6.0
        %v1502 = vmin.f32 %v1438, 6.0
        %v1503 = vmin.f32 %v1439, 6.0
        %v1504 = vmin.f32 %v1440, 6.0
        %v1505 = vmin.f32 %v1441, 6.0
        %v1506 = vmin.f32 %v1442, 6.0
        %v1507 = vmin.f32 %v1443, 6.0
        %v1508 = vmin.f32 %v1444, 6.0
        %v1509 = vmin.f32 %v1445, 6.0
        %v1510 = vmin.f32 %v1446, 6.0
        %v1511 = vmin.f32 %v1447, 6.0
        %v1512 = vmin.f32 %v1448, 6.0
        %v1513 = vmin.f32 %v1449, 6.0
        %v1514 = vmin.f32 %v1450, 6.0
        %v1515 = vmin.f32 %v1451, 6.0
        %v1516 = vmin.f32 %v1452, 6.0
        %v1517 = vmin.f32 %v1453, 6.0
        %v1518 = vmin.f32 %v1454, 6.0
        %v1519 = vmin.f32 %v1455, 6.0
        %v1520 = vmin.f32 %v1456, 6.0
        %v1521 = vmin.f32 %v1457, 6.0
        %v1522 = vmin.f32 %v1458, 6.0
        %v1523 = vmin.f32 %v1459, 6.0
        %v1524 = vmin.f32 %v1460, 6.0
        %v1525 = vmin.f32 %v1461, 6.0
        %v1526 = vmin.f32 %v1462, 6.0
        %v1527 = vmin.f32 %v1463, 6.0
        %v1528 = vmin.f32 %v1464, 6.0
        %v1529 = vmin.f32 %v1465, 6.0
        %v1530 = vmax.f32 %v1466, %v1467
        %v1531 = vmax.f32 %v1530, %v1468
        %v1532 = vmax.f32 %v1531, %v1469
        %v1533 = vmax.f32 %v1532, %v1470
        %v1534 = vmax.f32 %v1533, %v1471
        %v1535 = vmax.f32 %v1534, %v1472
        %v1536 = vmax.f32 %v1535, %v1473
        %v1537 = vrot.slane %v1536, 4
        %v1538 = vmax.f32 %v1536, %v1537
        %v1539 = vrot.slane %v1538, 2
        %v1540 = vmax.f32 %v1538, %v1539
        %v1541 = vrot.slane %v1540, 1
        %v1542 = vmax.f32 %v1540, %v1541
        %v1543 = vmax.f32 %v1474, %v1475
        %v1544 = vmax.f32 %v1543, %v1476
        %v1545 = vmax.f32 %v1544, %v1477
        %v1546 = vmax.f32 %v1545, %v1478
        %v1547 = vmax.f32 %v1546, %v1479
        %v1548 = vmax.f32 %v1547, %v1480
        %v1549 = vmax.f32 %v1548, %v1481
        %v1550 = vrot.slane %v1549, 4
        %v1551 = vmax.f32 %v1549, %v1550
        %v1552 = vrot.slane %v1551, 2
        %v1553 = vmax.f32 %v1551, %v1552
        %v1554 = vrot.slane %v1553, 1
        %v1555 = vmax.f32 %v1553, %v1554
        %v1556 = vmax.f32 %v1482, %v1483
        %v1557 = vmax.f32 %v1556, %v1484
        %v1558 = vmax.f32 %v1557, %v1485
        %v1559 = vmax.f32 %v1558, %v1486
        %v1560 = vmax.f32 %v1559, %v1487
        %v1561 = vmax.f32 %v1560, %v1488
        %v1562 = vmax.f32 %v1561, %v1489
        %v1563 = vrot.slane %v1562, 4
        %v1564 = vmax.f32 %v1562, %v1563
        %v1565 = vrot.slane %v1564, 2
        %v1566 = vmax.f32 %v1564, %v1565
        %v1567 = vrot.slane %v1566, 1
        %v1568 = vmax.f32 %v1566, %v1567
        %v1569 = vmax.f32 %v1490, %v1491
        %v1570 = vmax.f32 %v1569, %v1492
        %v1571 = vmax.f32 %v1570, %v1493
        %v1572 = vmax.f32 %v1571, %v1494
        %v1573 = vmax.f32 %v1572, %v1495
        %v1574 = vmax.f32 %v1573, %v1496
        %v1575 = vmax.f32 %v1574, %v1497
        %v1576 = vrot.slane %v1575, 4
        %v1577 = vmax.f32 %v1575, %v1576
        %v1578 = vrot.slane %v1577, 2
        %v1579 = vmax.f32 %v1577, %v1578
        %v1580 = vrot.slane %v1579, 1
        %v1581 = vmax.f32 %v1579, %v1580
        %v1582 = vmax.f32 %v1498, %v1499
        %v1583 = vmax.f32 %v1582, %v1500
        %v1584 = vmax.f32 %v1583, %v1501
        %v1585 = vmax.f32 %v1584, %v1502
        %v1586 = vmax.f32 %v1585, %v1503
        %v1587 = vmax.f32 %v1586, %v1504
        %v1588 = vmax.f32 %v1587, %v1505
        %v1589 = vrot.slane %v1588, 4
        %v1590 = vmax.f32 %v1588, %v1589
        %v1591 = vrot.slane %v1590, 2
        %v1592 = vmax.f32 %v1590, %v1591
        %v1593 = vrot.slane %v1592, 1
        %v1594 = vmax.f32 %v1592, %v1593
        %v1595 = vmax.f32 %v1506, %v1507
        %v1596 = vmax.f32 %v1595, %v1508
        %v1597 = vmax.f32 %v1596, %v1509
        %v1598 = vmax.f32 %v1597, %v1510
        %v1599 = vmax.f32 %v1598, %v1511
        %v1600 = vmax.f32 %v1599, %v1512
        %v1601 = vmax.f32 %v1600, %v1513
        %v1602 = vrot.slane %v1601, 4
        %v1603 = vmax.f32 %v1601, %v1602
        %v1604 = vrot.slane %v1603, 2
        %v1605 = vmax.f32 %v1603, %v1604
        %v1606 = vrot.slane %v1605, 1
        %v1607 = vmax.f32 %v1605, %v1606
        %v1608 = vmax.f32 %v1514, %v1515
        %v1609 = vmax.f32 %v1608, %v1516
        %v1610 = vmax.f32 %v1609, %v1517
        %v1611 = vmax.f32 %v1610, %v1518
        %v1612 = vmax.f32 %v1611, %v1519
        %v1613 = vmax.f32 %v1612, %v1520
        %v1614 = vmax.f32 %v1613, %v1521
        %v1615 = vrot.slane %v1614, 4
        %v1616 = vmax.f32 %v1614, %v1615
        %v1617 = vrot.slane %v1616, 2
        %v1618 = vmax.f32 %v1616, %v1617
        %v1619 = vrot.slane %v1618, 1
        %v1620 = vmax.f32 %v1618, %v1619
        %v1621 = vmax.f32 %v1522, %v1523
        %v1622 = vmax.f32 %v1621, %v1524
        %v1623 = vmax.f32 %v1622, %v1525
        %v1624 = vmax.f32 %v1623, %v1526
        %v1625 = vmax.f32 %v1624, %v1527
        %v1626 = vmax.f32 %v1625, %v1528
        %v1627 = vmax.f32 %v1626, %v1529
        %v1628 = vrot.slane %v1627, 4
        %v1629 = vmax.f32 %v1627, %v1628
        %v1630 = vrot.slane %v1629, 2
        %v1631 = vmax.f32 %v1629, %v1630
        %v1632 = vrot.slane %v1631, 1
        %v1633 = vmax.f32 %v1631, %v1632
        %v1634 = vpack.c.bf16 %v1542, %v1542
        %v1635 = vpack.c.bf16 %v1555, %v1555
        %v1636 = vpack.c.bf16 %v1568, %v1568
        %v1637 = vpack.c.bf16 %v1581, %v1581
        %v1638 = vpack.c.bf16 %v1594, %v1594
        %v1639 = vpack.c.bf16 %v1607, %v1607
        %v1640 = vpack.c.bf16 %v1620, %v1620
        %v1641 = vpack.c.bf16 %v1633, %v1633
        %v1642 = vld [vmem:[%s1] sm:$0xf]
        %v1643 = vld [vmem:[%s1 + $0x4] sm:$0xf]
        %v1644 = vld [vmem:[%s1 + $0x8] sm:$0xf]
        %v1645 = vld [vmem:[%s1 + $0xc] sm:$0xf]
        %v1646 = vld [vmem:[%s1 + $0x10] sm:$0xf]
        %v1647 = vld [vmem:[%s1 + $0x14] sm:$0xf]
        %v1648 = vld [vmem:[%s1 + $0x18] sm:$0xf]
        %v1649 = vld [vmem:[%s1 + $0x1c] sm:$0xf]
        %v1650 = vld [vmem:[%s1 + $0x20] sm:$0xf]
        %v1651 = vld [vmem:[%s1 + $0x24] sm:$0xf]
        %v1652 = vld [vmem:[%s1 + $0x28] sm:$0xf]
        %v1653 = vld [vmem:[%s1 + $0x2c] sm:$0xf]
        %v1654 = vld [vmem:[%s1 + $0x30] sm:$0xf]
        %v1655 = vld [vmem:[%s1 + $0x34] sm:$0xf]
        %v1656 = vld [vmem:[%s1 + $0x38] sm:$0xf]
        %v1657 = vld [vmem:[%s1 + $0x3c] sm:$0xf]
        %v1658 = vlaneseq
        %v1659 = vshrl.u32 %v1658, 7
        %v1660 = vsub.s32 2, %v1659
        %v1661 = vrot.slane %v214, %v1660
        %v1670 = vunpack.c.l.b16 %v1634
        %v1671 = vunpack.c.l.b16 %v1635
        %v1672 = vunpack.c.l.b16 %v1636
        %v1673 = vunpack.c.l.b16 %v1637
        %v1674 = vunpack.c.l.b16 %v1638
        %v1675 = vunpack.c.l.b16 %v1639
        %v1676 = vunpack.c.l.b16 %v1640
        %v1677 = vunpack.c.l.b16 %v1641
        %vm1678 = vcmask 1041409
        %v1679 = vsel %vm1678, %v1671, %v1670
        %vm1680 = vcmask 1042434
        %v1681 = vsel %vm1680, %v1672, %v1679
        %vm1682 = vcmask 1043459
        %v1683 = vsel %vm1682, %v1673, %v1681
        %vm1684 = vcmask 1044484
        %v1685 = vsel %vm1684, %v1674, %v1683
        %vm1686 = vcmask 1045509
        %v1687 = vsel %vm1686, %v1675, %v1685
        %vm1688 = vcmask 1046534
        %v1689 = vsel %vm1688, %v1676, %v1687
        %vm1690 = vcmask 1047559
        %v1691 = vsel %vm1690, %v1677, %v1689
        %v1692 = vpack.c.b16 %v1691, %v1691
        %v1710 = vunpack.c.l.b16 %v1642
        %v1711 = vunpack.c.l.b16 %v1643
        %v1712 = vunpack.c.l.b16 %v1644
        %v1713 = vunpack.c.l.b16 %v1645
        %v1714 = vunpack.c.l.b16 %v1646
        %v1715 = vunpack.c.l.b16 %v1647
        %v1716 = vunpack.c.l.b16 %v1648
        %v1717 = vunpack.c.l.b16 %v1649
        %v1718 = vunpack.c.l.b16 %v1650
        %v1719 = vunpack.c.l.b16 %v1651
        %v1720 = vunpack.c.l.b16 %v1652
        %v1721 = vunpack.c.l.b16 %v1653
        %v1722 = vunpack.c.l.b16 %v1654
        %v1723 = vunpack.c.l.b16 %v1655
        %v1724 = vunpack.c.l.b16 %v1656
        %v1725 = vunpack.c.l.b16 %v1657
        %v1726 = vpack.c.b16 %v1711, %v1710
        %v1727 = vpack.c.b16 %v1713, %v1712
        %v1728 = vpack.c.b16 %v1715, %v1714
        %v1729 = vpack.c.b16 %v1717, %v1716
        %v1730 = vpack.c.b16 %v1719, %v1718
        %v1731 = vpack.c.b16 %v1721, %v1720
        %v1732 = vpack.c.b16 %v1723, %v1722
        %v1733 = vpack.c.b16 %v1725, %v1724
        %1742 = vmatprep.subr.bf16.mxu0 0
        %1743 = vmatpush1.bf16.msra.mxu0 %v1726
        %1744 = vmatprep.subr.bf16.mxu0 0
        %1745 = vmatpush1.bf16.msra.mxu0 %v1727
        %1746 = vmatprep.subr.bf16.mxu0 0
        %1747 = vmatpush1.bf16.msra.mxu0 %v1728
        %1748 = vmatprep.subr.bf16.mxu0 0
        %1749 = vmatpush1.bf16.msra.mxu0 %v1729
        %1750 = vmatprep.subr.bf16.mxu0 0
        %1751 = vmatpush1.bf16.msra.mxu0 %v1730
        %1752 = vmatprep.subr.bf16.mxu0 0
        %1753 = vmatpush1.bf16.msra.mxu0 %v1731
        %1754 = vmatprep.subr.bf16.mxu0 0
        %1755 = vmatpush1.bf16.msra.mxu0 %v1732
        %1756 = vmatprep.subr.bf16.mxu0 0
        %1757 = vmatpush1.bf16.msra.mxu0 %v1733
        %1758 = vmatprep.subr.bf16.mxu0 0
        %1759 = vmatpush1.bf16.msra.mxu0 0
        %1760 = vmatprep.subr.bf16.mxu0 0
        %1761 = vmatpush1.bf16.msra.mxu0 0
        %1762 = vmatprep.subr.bf16.mxu0 0
        %1763 = vmatpush1.bf16.msra.mxu0 0
        %1764 = vmatprep.subr.bf16.mxu0 0
        %1765 = vmatpush1.bf16.msra.mxu0 0
        %1766 = vmatprep.subr.bf16.mxu0 0
        %1767 = vmatpush1.bf16.msra.mxu0 0
        %1768 = vmatprep.subr.bf16.mxu0 0
        %1769 = vmatpush1.bf16.msra.mxu0 0
        %1770 = vmatprep.subr.bf16.mxu0 0
        %1771 = vmatpush1.bf16.msra.mxu0 0
        %1772 = vmatprep.subr.bf16.mxu0 0
        %1773 = vmatpush1.bf16.msra.mxu0 0
        %1774 = vmatprep.mubr.bf16.mxu0 0
        %1775 = vmatmul.mubr.bf16.gmra.mrb[0].mxu0 %v1692
        %v1776 = vpop.f32.mrb[0].mxu0
        %v1777 = vadd.f32 %v1661, %v1776
        %v1778 = vpop.f32.mrb[0].mxu0
        %v1779 = vpop.f32.mrb[0].mxu0
        %v1780 = vpop.f32.mrb[0].mxu0
        %1781 = vdwg.mxu0
        %v1782 = vlaneseq
        %v1783 = vand.u32 %v1782, 127
        %vm1784 = vcmp.ge.s32.totalorder %v1783, 64
        %vm1785 = vcmp.lt.s32.totalorder %v1783, 96
        %vm1786 = vmand %vm1784, %vm1785
        %v1787 = vsel %vm1786, 1, 0
        %v1788 = vcvt.s32.f32 %v1787
        %v1789 = vadd.f32 %v1788, 1.0
        %v1794 = vunpack.c.l.b16 %v206
        %v1795 = vunpack.c.l.b16 %v207
        %v1796 = vunpack.c.l.b16 %v208
        %v1797 = vunpack.c.l.b16 %v209
        %v1798 = vpack.c.b16 %v1795, %v1794
        %v1799 = vpack.c.b16 %v1797, %v1796
        %v1803 = vsel %vm455, 0, 0
        %1805 = vmatprep.subr.bf16.mxu0 0
        %1806 = vmatpush1.bf16.msra.mxu0 %v1798
        %1807 = vmatprep.subr.bf16.mxu0 0
        %1808 = vmatpush1.bf16.msra.mxu0 %v1799
        %1809 = vmatprep.subr.bf16.mxu0 0
        %1810 = vmatpush1.bf16.msra.mxu0 0
        %1811 = vmatprep.subr.bf16.mxu0 0
        %1812 = vmatpush1.bf16.msra.mxu0 0
        %1813 = vmatprep.subr.bf16.mxu0 0
        %1814 = vmatpush1.bf16.msra.mxu0 0
        %1815 = vmatprep.subr.bf16.mxu0 0
        %1816 = vmatpush1.bf16.msra.mxu0 0
        %1817 = vmatprep.subr.bf16.mxu0 0
        %1818 = vmatpush1.bf16.msra.mxu0 0
        %1819 = vmatprep.subr.bf16.mxu0 0
        %1820 = vmatpush1.bf16.msra.mxu0 0
        %1821 = vmatprep.subr.bf16.mxu0 0
        %1822 = vmatpush1.bf16.msra.mxu0 0
        %1823 = vmatprep.subr.bf16.mxu0 0
        %1824 = vmatpush1.bf16.msra.mxu0 0
        %1825 = vmatprep.subr.bf16.mxu0 0
        %1826 = vmatpush1.bf16.msra.mxu0 0
        %1827 = vmatprep.subr.bf16.mxu0 0
        %1828 = vmatpush1.bf16.msra.mxu0 0
        %1829 = vmatprep.subr.bf16.mxu0 0
        %1830 = vmatpush1.bf16.msra.mxu0 0
        %1831 = vmatprep.subr.bf16.mxu0 0
        %1832 = vmatpush1.bf16.msra.mxu0 0
        %1833 = vmatprep.subr.bf16.mxu0 0
        %1834 = vmatpush1.bf16.msra.mxu0 0
        %1835 = vmatprep.subr.bf16.mxu0 0
        %1836 = vmatpush1.bf16.msra.mxu0 0
        %1837 = vmatprep.mubr.bf16.mxu0 0
        %1838 = vmatmul.mubr.bf16.gmra.mrb[0].mxu0 %v1803
        %v1839 = vpop.f32.mrb[0].mxu0
        %v1840 = vadd.f32 0.0, %v1839
        %v1841 = vpop.f32.mrb[0].mxu0
        %v1842 = vpop.f32.mrb[0].mxu0
        %v1843 = vpop.f32.mrb[0].mxu0
        %1844 = vdwg.mxu0
        %v1845 = vadd.f32 %v1777, %v1840
        %v1846 = vmul.f32 %v1845, %v1789
        %v1847 = vxor.u32 %v1846, 2147483648
        %v1848 = vmul.f32 %v1847, 1.442695
        %v1849 = vpow.pop %v1848
        %v1850 = vadd.f32 %v1849, 1.0
        %v1851 = vrcp.pop %v1850
        %v1852 = vmul.f32 1.0, %v1851
        %v1853 = vmul.f32 %v1852, %v1789
        %v1854 = vsub.f32 %v1853, %v1788
        %v1855 = vmul.f32 %v1854, 0.0
        %1857 = vrot.lane.b32.xlu0 %v1854, 64
        %v1858 = vpop.permute.xlu0 %1857
        %v1860 = vmul.f32 %v1854, %v1858
        %1862 = vrot.lane.b32.xlu0 %v1860, 32
        %v1863 = vpop.permute.xlu0 %1862
        %v1865 = vadd.f32 %v1855, %v1863
        %v1866 = vtanh.pop %v1865
        %1868 = vrot.lane.b32.xlu0 %v1866, 64
        %v1869 = vpop.permute.xlu0 %1868
        %v1871 = vmul.f32 %v1854, %v1869
        %v1872 = vpack.c.bf16 %v1871, %v1871
        %1874 = vrot.lane.b32.xlu0 %v1872, 32
        %v1875 = vpop.permute.xlu0 %1874
        %v1877 = vsel %vm455, %v1875, 0
        %1879 = vmatprep.subr.bf16.mxu0 0
        %1880 = vmatpush1.bf16.msra.mxu0 %v1798
        %1881 = vmatprep.subr.bf16.mxu0 0
        %1882 = vmatpush1.bf16.msra.mxu0 %v1799
        %1883 = vmatprep.subr.bf16.mxu0 0
        %1884 = vmatpush1.bf16.msra.mxu0 0
        %1885 = vmatprep.subr.bf16.mxu0 0
        %1886 = vmatpush1.bf16.msra.mxu0 0
        %1887 = vmatprep.subr.bf16.mxu0 0
        %1888 = vmatpush1.bf16.msra.mxu0 0
        %1889 = vmatprep.subr.bf16.mxu0 0
        %1890 = vmatpush1.bf16.msra.mxu0 0
        %1891 = vmatprep.subr.bf16.mxu0 0
        %1892 = vmatpush1.bf16.msra.mxu0 0
        %1893 = vmatprep.subr.bf16.mxu0 0
        %1894 = vmatpush1.bf16.msra.mxu0 0
        %1895 = vmatprep.subr.bf16.mxu0 0
        %1896 = vmatpush1.bf16.msra.mxu0 0
        %1897 = vmatprep.subr.bf16.mxu0 0
        %1898 = vmatpush1.bf16.msra.mxu0 0
        %1899 = vmatprep.subr.bf16.mxu0 0
        %1900 = vmatpush1.bf16.msra.mxu0 0
        %1901 = vmatprep.subr.bf16.mxu0 0
        %1902 = vmatpush1.bf16.msra.mxu0 0
        %1903 = vmatprep.subr.bf16.mxu0 0
        %1904 = vmatpush1.bf16.msra.mxu0 0
        %1905 = vmatprep.subr.bf16.mxu0 0
        %1906 = vmatpush1.bf16.msra.mxu0 0
        %1907 = vmatprep.subr.bf16.mxu0 0
        %1908 = vmatpush1.bf16.msra.mxu0 0
        %1909 = vmatprep.subr.bf16.mxu0 0
        %1910 = vmatpush1.bf16.msra.mxu0 0
        %1911 = vmatprep.mubr.bf16.mxu0 0
        %1912 = vmatmul.mubr.bf16.gmra.mrb[0].mxu0 %v1877
        %v1913 = vpop.f32.mrb[0].mxu0
        %v1914 = vadd.f32 0.0, %v1913
        %v1915 = vpop.f32.mrb[0].mxu0
        %v1916 = vpop.f32.mrb[0].mxu0
        %v1917 = vpop.f32.mrb[0].mxu0
        %1918 = vdwg.mxu0
        %v1920 = vrot.slane %v1914, 7
        %v1922 = vadd.f32 %v1777, %v1920
        %v1923 = vmul.f32 %v1922, %v1789
        %v1924 = vxor.u32 %v1923, 2147483648
        %v1925 = vmul.f32 %v1924, 1.442695
        %v1926 = vpow.pop %v1925
        %v1927 = vadd.f32 %v1926, 1.0
        %v1928 = vrcp.pop %v1927
        %v1929 = vmul.f32 1.0, %v1928
        %v1930 = vmul.f32 %v1929, %v1789
        %v1931 = vsub.f32 %v1930, %v1788
        %v1933 = vrot.slane %v1865, 7
        %v1935 = vmul.f32 %v1931, %v1933
        %1937 = vrot.lane.b32.xlu0 %v1931, 64
        %v1938 = vpop.permute.xlu0 %1937
        %v1940 = vmul.f32 %v1931, %v1938
        %1942 = vrot.lane.b32.xlu0 %v1940, 32
        %v1943 = vpop.permute.xlu0 %1942
        %v1945 = vadd.f32 %v1935, %v1943
        %v1946 = vtanh.pop %v1945
        %1948 = vrot.lane.b32.xlu0 %v1946, 64
        %v1949 = vpop.permute.xlu0 %1948
        %v1951 = vmul.f32 %v1931, %v1949
        %v1952 = vpack.c.bf16 %v1951, %v1951
        %v1954 = vshrl.u32 %v1952, 16
        %1956 = vrot.lane.b32.xlu0 %v1954, 32
        %v1957 = vpop.permute.xlu0 %1956
        %v1959 = vsel %vm455, %v1957, 0
        %1961 = vmatprep.subr.bf16.mxu0 0
        %1962 = vmatpush1.bf16.msra.mxu0 %v1798
        %1963 = vmatprep.subr.bf16.mxu0 0
        %1964 = vmatpush1.bf16.msra.mxu0 %v1799
        %1965 = vmatprep.subr.bf16.mxu0 0
        %1966 = vmatpush1.bf16.msra.mxu0 0
        %1967 = vmatprep.subr.bf16.mxu0 0
        %1968 = vmatpush1.bf16.msra.mxu0 0
        %1969 = vmatprep.subr.bf16.mxu0 0
        %1970 = vmatpush1.bf16.msra.mxu0 0
        %1971 = vmatprep.subr.bf16.mxu0 0
        %1972 = vmatpush1.bf16.msra.mxu0 0
        %1973 = vmatprep.subr.bf16.mxu0 0
        %1974 = vmatpush1.bf16.msra.mxu0 0
        %1975 = vmatprep.subr.bf16.mxu0 0
        %1976 = vmatpush1.bf16.msra.mxu0 0
        %1977 = vmatprep.subr.bf16.mxu0 0
        %1978 = vmatpush1.bf16.msra.mxu0 0
        %1979 = vmatprep.subr.bf16.mxu0 0
        %1980 = vmatpush1.bf16.msra.mxu0 0
        %1981 = vmatprep.subr.bf16.mxu0 0
        %1982 = vmatpush1.bf16.msra.mxu0 0
        %1983 = vmatprep.subr.bf16.mxu0 0
        %1984 = vmatpush1.bf16.msra.mxu0 0
        %1985 = vmatprep.subr.bf16.mxu0 0
        %1986 = vmatpush1.bf16.msra.mxu0 0
        %1987 = vmatprep.subr.bf16.mxu0 0
        %1988 = vmatpush1.bf16.msra.mxu0 0
        %1989 = vmatprep.subr.bf16.mxu0 0
        %1990 = vmatpush1.bf16.msra.mxu0 0
        %1991 = vmatprep.subr.bf16.mxu0 0
        %1992 = vmatpush1.bf16.msra.mxu0 0
        %1993 = vmatprep.mubr.bf16.mxu0 0
        %1994 = vmatmul.mubr.bf16.gmra.mrb[0].mxu0 %v1959
        %v1995 = vpop.f32.mrb[0].mxu0
        %v1996 = vadd.f32 0.0, %v1995
        %v1997 = vpop.f32.mrb[0].mxu0
        %v1998 = vpop.f32.mrb[0].mxu0
        %v1999 = vpop.f32.mrb[0].mxu0
        %2000 = vdwg.mxu0
        %v2002 = vrot.slane %v1996, 6
        %v2004 = vadd.f32 %v1777, %v2002
        %v2005 = vmul.f32 %v2004, %v1789
        %v2006 = vxor.u32 %v2005, 2147483648
        %v2007 = vmul.f32 %v2006, 1.442695
        %v2008 = vpow.pop %v2007
        %v2009 = vadd.f32 %v2008, 1.0
        %v2010 = vrcp.pop %v2009
        %v2011 = vmul.f32 1.0, %v2010
        %v2012 = vmul.f32 %v2011, %v1789
        %v2013 = vsub.f32 %v2012, %v1788
        %v2015 = vrot.slane %v1945, 7
        %v2017 = vmul.f32 %v2013, %v2015
        %2019 = vrot.lane.b32.xlu0 %v2013, 64
        %v2020 = vpop.permute.xlu0 %2019
        %v2022 = vmul.f32 %v2013, %v2020
        %2024 = vrot.lane.b32.xlu0 %v2022, 32
        %v2025 = vpop.permute.xlu0 %2024
        %v2027 = vadd.f32 %v2017, %v2025
        %v2028 = vtanh.pop %v2027
        %2030 = vrot.lane.b32.xlu0 %v2028, 64
        %v2031 = vpop.permute.xlu0 %2030
        %v2033 = vmul.f32 %v2013, %v2031
        %v2034 = vpack.c.bf16 %v2033, %v2033
        %v2036 = vrot.slane %v2034, 1
        %2037 = vrot.lane.b32.xlu0 %v2036, 32
        %v2038 = vpop.permute.xlu0 %2037
        %v2040 = vsel %vm455, %v2038, 0
        %2042 = vmatprep.subr.bf16.mxu0 0
        %2043 = vmatpush1.bf16.msra.mxu0 %v1798
        %2044 = vmatprep.subr.bf16.mxu0 0
        %2045 = vmatpush1.bf16.msra.mxu0 %v1799
        %2046 = vmatprep.subr.bf16.mxu0 0
        %2047 = vmatpush1.bf16.msra.mxu0 0
        %2048 = vmatprep.subr.bf16.mxu0 0
        %2049 = vmatpush1.bf16.msra.mxu0 0
        %2050 = vmatprep.subr.bf16.mxu0 0
        %2051 = vmatpush1.bf16.msra.mxu0 0
        %2052 = vmatprep.subr.bf16.mxu0 0
        %2053 = vmatpush1.bf16.msra.mxu0 0
        %2054 = vmatprep.subr.bf16.mxu0 0
        %2055 = vmatpush1.bf16.msra.mxu0 0
        %2056 = vmatprep.subr.bf16.mxu0 0
        %2057 = vmatpush1.bf16.msra.mxu0 0
        %2058 = vmatprep.subr.bf16.mxu0 0
        %2059 = vmatpush1.bf16.msra.mxu0 0
        %2060 = vmatprep.subr.bf16.mxu0 0
        %2061 = vmatpush1.bf16.msra.mxu0 0
        %2062 = vmatprep.subr.bf16.mxu0 0
        %2063 = vmatpush1.bf16.msra.mxu0 0
        %2064 = vmatprep.subr.bf16.mxu0 0
        %2065 = vmatpush1.bf16.msra.mxu0 0
        %2066 = vmatprep.subr.bf16.mxu0 0
        %2067 = vmatpush1.bf16.msra.mxu0 0
        %2068 = vmatprep.subr.bf16.mxu0 0
        %2069 = vmatpush1.bf16.msra.mxu0 0
        %2070 = vmatprep.subr.bf16.mxu0 0
        %2071 = vmatpush1.bf16.msra.mxu0 0
        %2072 = vmatprep.subr.bf16.mxu0 0
        %2073 = vmatpush1.bf16.msra.mxu0 0
        %2074 = vmatprep.mubr.bf16.mxu0 0
        %2075 = vmatmul.mubr.bf16.gmra.mrb[0].mxu0 %v2040
        %v2076 = vpop.f32.mrb[0].mxu0
        %v2077 = vadd.f32 0.0, %v2076
        %v2078 = vpop.f32.mrb[0].mxu0
        %v2079 = vpop.f32.mrb[0].mxu0
        %v2080 = vpop.f32.mrb[0].mxu0
        %2081 = vdwg.mxu0
        %v2083 = vrot.slane %v2077, 5
        %v2085 = vadd.f32 %v1777, %v2083
        %v2086 = vmul.f32 %v2085, %v1789
        %v2087 = vxor.u32 %v2086, 2147483648
        %v2088 = vmul.f32 %v2087, 1.442695
        %v2089 = vpow.pop %v2088
        %v2090 = vadd.f32 %v2089, 1.0
        %v2091 = vrcp.pop %v2090
        %v2092 = vmul.f32 1.0, %v2091
        %v2093 = vmul.f32 %v2092, %v1789
        %v2094 = vsub.f32 %v2093, %v1788
        %v2096 = vrot.slane %v2027, 7
        %v2098 = vmul.f32 %v2094, %v2096
        %2100 = vrot.lane.b32.xlu0 %v2094, 64
        %v2101 = vpop.permute.xlu0 %2100
        %v2103 = vmul.f32 %v2094, %v2101
        %2105 = vrot.lane.b32.xlu0 %v2103, 32
        %v2106 = vpop.permute.xlu0 %2105
        %v2108 = vadd.f32 %v2098, %v2106
        %v2109 = vtanh.pop %v2108
        %2111 = vrot.lane.b32.xlu0 %v2109, 64
        %v2112 = vpop.permute.xlu0 %2111
        %v2114 = vmul.f32 %v2094, %v2112
        %v2115 = vpack.c.bf16 %v2114, %v2114
        %v2117 = vshrl.u32 %v2115, 16
        %v2119 = vrot.slane %v2117, 1
        %2120 = vrot.lane.b32.xlu0 %v2119, 32
        %v2121 = vpop.permute.xlu0 %2120
        %v2123 = vsel %vm455, %v2121, 0
        %2125 = vmatprep.subr.bf16.mxu0 0
        %2126 = vmatpush1.bf16.msra.mxu0 %v1798
        %2127 = vmatprep.subr.bf16.mxu0 0
        %2128 = vmatpush1.bf16.msra.mxu0 %v1799
        %2129 = vmatprep.subr.bf16.mxu0 0
        %2130 = vmatpush1.bf16.msra.mxu0 0
        %2131 = vmatprep.subr.bf16.mxu0 0
        %2132 = vmatpush1.bf16.msra.mxu0 0
        %2133 = vmatprep.subr.bf16.mxu0 0
        %2134 = vmatpush1.bf16.msra.mxu0 0
        %2135 = vmatprep.subr.bf16.mxu0 0
        %2136 = vmatpush1.bf16.msra.mxu0 0
        %2137 = vmatprep.subr.bf16.mxu0 0
        %2138 = vmatpush1.bf16.msra.mxu0 0
        %2139 = vmatprep.subr.bf16.mxu0 0
        %2140 = vmatpush1.bf16.msra.mxu0 0
        %2141 = vmatprep.subr.bf16.mxu0 0
        %2142 = vmatpush1.bf16.msra.mxu0 0
        %2143 = vmatprep.subr.bf16.mxu0 0
        %2144 = vmatpush1.bf16.msra.mxu0 0
        %2145 = vmatprep.subr.bf16.mxu0 0
        %2146 = vmatpush1.bf16.msra.mxu0 0
        %2147 = vmatprep.subr.bf16.mxu0 0
        %2148 = vmatpush1.bf16.msra.mxu0 0
        %2149 = vmatprep.subr.bf16.mxu0 0
        %2150 = vmatpush1.bf16.msra.mxu0 0
        %2151 = vmatprep.subr.bf16.mxu0 0
        %2152 = vmatpush1.bf16.msra.mxu0 0
        %2153 = vmatprep.subr.bf16.mxu0 0
        %2154 = vmatpush1.bf16.msra.mxu0 0
        %2155 = vmatprep.subr.bf16.mxu0 0
        %2156 = vmatpush1.bf16.msra.mxu0 0
        %2157 = vmatprep.mubr.bf16.mxu0 0
        %2158 = vmatmul.mubr.bf16.gmra.mrb[0].mxu0 %v2123
        %v2159 = vpop.f32.mrb[0].mxu0
        %v2160 = vadd.f32 0.0, %v2159
        %v2161 = vpop.f32.mrb[0].mxu0
        %v2162 = vpop.f32.mrb[0].mxu0
        %v2163 = vpop.f32.mrb[0].mxu0
        %2164 = vdwg.mxu0
        %v2166 = vrot.slane %v2160, 4
        %v2168 = vadd.f32 %v1777, %v2166
        %v2169 = vmul.f32 %v2168, %v1789
        %v2170 = vxor.u32 %v2169, 2147483648
        %v2171 = vmul.f32 %v2170, 1.442695
        %v2172 = vpow.pop %v2171
        %v2173 = vadd.f32 %v2172, 1.0
        %v2174 = vrcp.pop %v2173
        %v2175 = vmul.f32 1.0, %v2174
        %v2176 = vmul.f32 %v2175, %v1789
        %v2177 = vsub.f32 %v2176, %v1788
        %v2179 = vrot.slane %v2108, 7
        %v2181 = vmul.f32 %v2177, %v2179
        %2183 = vrot.lane.b32.xlu0 %v2177, 64
        %v2184 = vpop.permute.xlu0 %2183
        %v2186 = vmul.f32 %v2177, %v2184
        %2188 = vrot.lane.b32.xlu0 %v2186, 32
        %v2189 = vpop.permute.xlu0 %2188
        %v2191 = vadd.f32 %v2181, %v2189
        %v2192 = vtanh.pop %v2191
        %2194 = vrot.lane.b32.xlu0 %v2192, 64
        %v2195 = vpop.permute.xlu0 %2194
        %v2197 = vmul.f32 %v2177, %v2195
        %v2198 = vpack.c.bf16 %v2197, %v2197
        %v2200 = vrot.slane %v2198, 2
        %2201 = vrot.lane.b32.xlu0 %v2200, 32
        %v2202 = vpop.permute.xlu0 %2201
        %v2204 = vsel %vm455, %v2202, 0
        %2206 = vmatprep.subr.bf16.mxu0 0
        %2207 = vmatpush1.bf16.msra.mxu0 %v1798
        %2208 = vmatprep.subr.bf16.mxu0 0
        %2209 = vmatpush1.bf16.msra.mxu0 %v1799
        %2210 = vmatprep.subr.bf16.mxu0 0
        %2211 = vmatpush1.bf16.msra.mxu0 0
        %2212 = vmatprep.subr.bf16.mxu0 0
        %2213 = vmatpush1.bf16.msra.mxu0 0
        %2214 = vmatprep.subr.bf16.mxu0 0
        %2215 = vmatpush1.bf16.msra.mxu0 0
        %2216 = vmatprep.subr.bf16.mxu0 0
        %2217 = vmatpush1.bf16.msra.mxu0 0
        %2218 = vmatprep.subr.bf16.mxu0 0
        %2219 = vmatpush1.bf16.msra.mxu0 0
        %2220 = vmatprep.subr.bf16.mxu0 0
        %2221 = vmatpush1.bf16.msra.mxu0 0
        %2222 = vmatprep.subr.bf16.mxu0 0
        %2223 = vmatpush1.bf16.msra.mxu0 0
        %2224 = vmatprep.subr.bf16.mxu0 0
        %2225 = vmatpush1.bf16.msra.mxu0 0
        %2226 = vmatprep.subr.bf16.mxu0 0
        %2227 = vmatpush1.bf16.msra.mxu0 0
        %2228 = vmatprep.subr.bf16.mxu0 0
        %2229 = vmatpush1.bf16.msra.mxu0 0
        %2230 = vmatprep.subr.bf16.mxu0 0
        %2231 = vmatpush1.bf16.msra.mxu0 0
        %2232 = vmatprep.subr.bf16.mxu0 0
        %2233 = vmatpush1.bf16.msra.mxu0 0
        %2234 = vmatprep.subr.bf16.mxu0 0
        %2235 = vmatpush1.bf16.msra.mxu0 0
        %2236 = vmatprep.subr.bf16.mxu0 0
        %2237 = vmatpush1.bf16.msra.mxu0 0
        %2238 = vmatprep.mubr.bf16.mxu0 0
        %2239 = vmatmul.mubr.bf16.gmra.mrb[0].mxu0 %v2204
        %v2240 = vpop.f32.mrb[0].mxu0
        %v2241 = vadd.f32 0.0, %v2240
        %v2242 = vpop.f32.mrb[0].mxu0
        %v2243 = vpop.f32.mrb[0].mxu0
        %v2244 = vpop.f32.mrb[0].mxu0
        %2245 = vdwg.mxu0
        %v2247 = vrot.slane %v2241, 3
        %v2249 = vadd.f32 %v1777, %v2247
        %v2250 = vmul.f32 %v2249, %v1789
        %v2251 = vxor.u32 %v2250, 2147483648
        %v2252 = vmul.f32 %v2251, 1.442695
        %v2253 = vpow.pop %v2252
        %v2254 = vadd.f32 %v2253, 1.0
        %v2255 = vrcp.pop %v2254
        %v2256 = vmul.f32 1.0, %v2255
        %v2257 = vmul.f32 %v2256, %v1789
        %v2258 = vsub.f32 %v2257, %v1788
        %v2260 = vrot.slane %v2191, 7
        %v2262 = vmul.f32 %v2258, %v2260
        %2264 = vrot.lane.b32.xlu0 %v2258, 64
        %v2265 = vpop.permute.xlu0 %2264
        %v2267 = vmul.f32 %v2258, %v2265
        %2269 = vrot.lane.b32.xlu0 %v2267, 32
        %v2270 = vpop.permute.xlu0 %2269
        %v2272 = vadd.f32 %v2262, %v2270
        %v2273 = vtanh.pop %v2272
        %2275 = vrot.lane.b32.xlu0 %v2273, 64
        %v2276 = vpop.permute.xlu0 %2275
        %v2278 = vmul.f32 %v2258, %v2276
        %v2279 = vpack.c.bf16 %v2278, %v2278
        %v2281 = vshrl.u32 %v2279, 16
        %v2283 = vrot.slane %v2281, 2
        %2284 = vrot.lane.b32.xlu0 %v2283, 32
        %v2285 = vpop.permute.xlu0 %2284
        %v2287 = vsel %vm455, %v2285, 0
        %2289 = vmatprep.subr.bf16.mxu0 0
        %2290 = vmatpush1.bf16.msra.mxu0 %v1798
        %2291 = vmatprep.subr.bf16.mxu0 0
        %2292 = vmatpush1.bf16.msra.mxu0 %v1799
        %2293 = vmatprep.subr.bf16.mxu0 0
        %2294 = vmatpush1.bf16.msra.mxu0 0
        %2295 = vmatprep.subr.bf16.mxu0 0
        %2296 = vmatpush1.bf16.msra.mxu0 0
        %2297 = vmatprep.subr.bf16.mxu0 0
        %2298 = vmatpush1.bf16.msra.mxu0 0
        %2299 = vmatprep.subr.bf16.mxu0 0
        %2300 = vmatpush1.bf16.msra.mxu0 0
        %2301 = vmatprep.subr.bf16.mxu0 0
        %2302 = vmatpush1.bf16.msra.mxu0 0
        %2303 = vmatprep.subr.bf16.mxu0 0
        %2304 = vmatpush1.bf16.msra.mxu0 0
        %2305 = vmatprep.subr.bf16.mxu0 0
        %2306 = vmatpush1.bf16.msra.mxu0 0
        %2307 = vmatprep.subr.bf16.mxu0 0
        %2308 = vmatpush1.bf16.msra.mxu0 0
        %2309 = vmatprep.subr.bf16.mxu0 0
        %2310 = vmatpush1.bf16.msra.mxu0 0
        %2311 = vmatprep.subr.bf16.mxu0 0
        %2312 = vmatpush1.bf16.msra.mxu0 0
        %2313 = vmatprep.subr.bf16.mxu0 0
        %2314 = vmatpush1.bf16.msra.mxu0 0
        %2315 = vmatprep.subr.bf16.mxu0 0
        %2316 = vmatpush1.bf16.msra.mxu0 0
        %2317 = vmatprep.subr.bf16.mxu0 0
        %2318 = vmatpush1.bf16.msra.mxu0 0
        %2319 = vmatprep.subr.bf16.mxu0 0
        %2320 = vmatpush1.bf16.msra.mxu0 0
        %2321 = vmatprep.mubr.bf16.mxu0 0
        %2322 = vmatmul.mubr.bf16.gmra.mrb[0].mxu0 %v2287
        %v2323 = vpop.f32.mrb[0].mxu0
        %v2324 = vadd.f32 0.0, %v2323
        %v2325 = vpop.f32.mrb[0].mxu0
        %v2326 = vpop.f32.mrb[0].mxu0
        %v2327 = vpop.f32.mrb[0].mxu0
        %2328 = vdwg.mxu0
        %v2330 = vrot.slane %v2324, 2
        %v2332 = vadd.f32 %v1777, %v2330
        %v2333 = vmul.f32 %v2332, %v1789
        %v2334 = vxor.u32 %v2333, 2147483648
        %v2335 = vmul.f32 %v2334, 1.442695
        %v2336 = vpow.pop %v2335
        %v2337 = vadd.f32 %v2336, 1.0
        %v2338 = vrcp.pop %v2337
        %v2339 = vmul.f32 1.0, %v2338
        %v2340 = vmul.f32 %v2339, %v1789
        %v2341 = vsub.f32 %v2340, %v1788
        %v2343 = vrot.slane %v2272, 7
        %v2345 = vmul.f32 %v2341, %v2343
        %2347 = vrot.lane.b32.xlu0 %v2341, 64
        %v2348 = vpop.permute.xlu0 %2347
        %v2350 = vmul.f32 %v2341, %v2348
        %2352 = vrot.lane.b32.xlu0 %v2350, 32
        %v2353 = vpop.permute.xlu0 %2352
        %v2355 = vadd.f32 %v2345, %v2353
        %v2356 = vtanh.pop %v2355
        %2358 = vrot.lane.b32.xlu0 %v2356, 64
        %v2359 = vpop.permute.xlu0 %2358
        %v2361 = vmul.f32 %v2341, %v2359
        %v2362 = vpack.c.bf16 %v2361, %v2361
        %v2364 = vrot.slane %v2362, 3
        %2365 = vrot.lane.b32.xlu0 %v2364, 32
        %v2366 = vpop.permute.xlu0 %2365
        %v2368 = vsel %vm455, %v2366, 0
        %2370 = vmatprep.subr.bf16.mxu0 0
        %2371 = vmatpush1.bf16.msra.mxu0 %v1798
        %2372 = vmatprep.subr.bf16.mxu0 0
        %2373 = vmatpush1.bf16.msra.mxu0 %v1799
        %2374 = vmatprep.subr.bf16.mxu0 0
        %2375 = vmatpush1.bf16.msra.mxu0 0
        %2376 = vmatprep.subr.bf16.mxu0 0
        %2377 = vmatpush1.bf16.msra.mxu0 0
        %2378 = vmatprep.subr.bf16.mxu0 0
        %2379 = vmatpush1.bf16.msra.mxu0 0
        %2380 = vmatprep.subr.bf16.mxu0 0
        %2381 = vmatpush1.bf16.msra.mxu0 0
        %2382 = vmatprep.subr.bf16.mxu0 0
        %2383 = vmatpush1.bf16.msra.mxu0 0
        %2384 = vmatprep.subr.bf16.mxu0 0
        %2385 = vmatpush1.bf16.msra.mxu0 0
        %2386 = vmatprep.subr.bf16.mxu0 0
        %2387 = vmatpush1.bf16.msra.mxu0 0
        %2388 = vmatprep.subr.bf16.mxu0 0
        %2389 = vmatpush1.bf16.msra.mxu0 0
        %2390 = vmatprep.subr.bf16.mxu0 0
        %2391 = vmatpush1.bf16.msra.mxu0 0
        %2392 = vmatprep.subr.bf16.mxu0 0
        %2393 = vmatpush1.bf16.msra.mxu0 0
        %2394 = vmatprep.subr.bf16.mxu0 0
        %2395 = vmatpush1.bf16.msra.mxu0 0
        %2396 = vmatprep.subr.bf16.mxu0 0
        %2397 = vmatpush1.bf16.msra.mxu0 0
        %2398 = vmatprep.subr.bf16.mxu0 0
        %2399 = vmatpush1.bf16.msra.mxu0 0
        %2400 = vmatprep.subr.bf16.mxu0 0
        %2401 = vmatpush1.bf16.msra.mxu0 0
        %2402 = vmatprep.mubr.bf16.mxu0 0
        %2403 = vmatmul.mubr.bf16.gmra.mrb[0].mxu0 %v2368
        %v2404 = vpop.f32.mrb[0].mxu0
        %v2405 = vadd.f32 0.0, %v2404
        %v2406 = vpop.f32.mrb[0].mxu0
        %v2407 = vpop.f32.mrb[0].mxu0
        %v2408 = vpop.f32.mrb[0].mxu0
        %2409 = vdwg.mxu0
        %v2411 = vrot.slane %v2405, 1
        %v2413 = vadd.f32 %v1777, %v2411
        %v2414 = vmul.f32 %v2413, %v1789
        %v2415 = vxor.u32 %v2414, 2147483648
        %v2416 = vmul.f32 %v2415, 1.442695
        %v2417 = vpow.pop %v2416
        %v2418 = vadd.f32 %v2417, 1.0
        %v2419 = vrcp.pop %v2418
        %v2420 = vmul.f32 1.0, %v2419
        %v2421 = vmul.f32 %v2420, %v1789
        %v2422 = vsub.f32 %v2421, %v1788
        %v2424 = vrot.slane %v2355, 7
        %v2426 = vmul.f32 %v2422, %v2424
        %2428 = vrot.lane.b32.xlu0 %v2422, 64
        %v2429 = vpop.permute.xlu0 %2428
        %v2431 = vmul.f32 %v2422, %v2429
        %2433 = vrot.lane.b32.xlu0 %v2431, 32
        %v2434 = vpop.permute.xlu0 %2433
        %v2436 = vadd.f32 %v2426, %v2434
        %v2437 = vtanh.pop %v2436
        %2439 = vrot.lane.b32.xlu0 %v2437, 64
        %v2440 = vpop.permute.xlu0 %2439
        %v2442 = vmul.f32 %v2422, %v2440
        %v2443 = vpack.c.bf16 %v2442, %v2442
        %v2445 = vshrl.u32 %v2443, 16
        %v2447 = vrot.slane %v2445, 3
        %2448 = vrot.lane.b32.xlu0 %v2447, 32
        %v2449 = vpop.permute.xlu0 %2448
        %v2454 = vunpack.c.l.b16 %v210
        %v2455 = vunpack.c.l.b16 %v211
        %v2456 = vunpack.c.l.b16 %v212
        %v2457 = vunpack.c.l.b16 %v213
        %v2458 = vpack.c.b16 %v2455, %v2454
        %v2459 = vpack.c.b16 %v2457, %v2456
        %v2463 = vrot.slane %v214, 3
        %v2466 = vsel %vm455, %v2449, 0
        %2468 = vmatprep.subr.bf16.mxu0 0
        %2469 = vmatpush1.bf16.msra.mxu0 %v2458
        %2470 = vmatprep.subr.bf16.mxu0 0
        %2471 = vmatpush1.bf16.msra.mxu0 %v2459
        %2472 = vmatprep.subr.bf16.mxu0 0
        %2473 = vmatpush1.bf16.msra.mxu0 0
        %2474 = vmatprep.subr.bf16.mxu0 0
        %2475 = vmatpush1.bf16.msra.mxu0 0
        %2476 = vmatprep.subr.bf16.mxu0 0
        %2477 = vmatpush1.bf16.msra.mxu0 0
        %2478 = vmatprep.subr.bf16.mxu0 0
        %2479 = vmatpush1.bf16.msra.mxu0 0
        %2480 = vmatprep.subr.bf16.mxu0 0
        %2481 = vmatpush1.bf16.msra.mxu0 0
        %2482 = vmatprep.subr.bf16.mxu0 0
        %2483 = vmatpush1.bf16.msra.mxu0 0
        %2484 = vmatprep.subr.bf16.mxu0 0
        %2485 = vmatpush1.bf16.msra.mxu0 0
        %2486 = vmatprep.subr.bf16.mxu0 0
        %2487 = vmatpush1.bf16.msra.mxu0 0
        %2488 = vmatprep.subr.bf16.mxu0 0
        %2489 = vmatpush1.bf16.msra.mxu0 0
        %2490 = vmatprep.subr.bf16.mxu0 0
        %2491 = vmatpush1.bf16.msra.mxu0 0
        %2492 = vmatprep.subr.bf16.mxu0 0
        %2493 = vmatpush1.bf16.msra.mxu0 0
        %2494 = vmatprep.subr.bf16.mxu0 0
        %2495 = vmatpush1.bf16.msra.mxu0 0
        %2496 = vmatprep.subr.bf16.mxu0 0
        %2497 = vmatpush1.bf16.msra.mxu0 0
        %2498 = vmatprep.subr.bf16.mxu0 0
        %2499 = vmatpush1.bf16.msra.mxu0 0
        %2500 = vmatprep.mubr.bf16.mxu0 0
        %2501 = vmatmul.mubr.bf16.gmra.mrb[0].mxu0 %v2466
        %v2502 = vpop.f32.mrb[0].mxu0
        %v2503 = vadd.f32 %v2463, %v2502
        %v2504 = vpop.f32.mrb[0].mxu0
        %v2505 = vpop.f32.mrb[0].mxu0
        %v2506 = vpop.f32.mrb[0].mxu0
        %2507 = vdwg.mxu0
        %vm2508 = vcmask 8192
        %2509 = vst.msk [vmem:[%s190] sm:$0x1] %vm2508, %v2503
        %s2510 = sand.u32 %s115, 1
        %s2511 = scalar_lea.sflag [#allocation3], %s2510
        %s2512 = sand.u32 %s115, 1
        %s2513 = scalar_lea.vmem [#allocation2], %s2512
        // Predicated region
        $region37: #{conv_lstm_classifier.1} parent=35 // pred_check
          %p2514 = pneg %p125
        $region38: #{conv_lstm_classifier.1} parent=35 // pred_check_branch
          %2516 = sbr.rel (%p2514) target = $region40
        $region39: #{conv_lstm_classifier.1} parent=35 // pred_region
          %s2518 = ssub.s32 16, 16
          %2519 = vsyncadd %s2511, %s2518
          %s2520 = smul.addr %s18, 16
          %s2521 = scalar_lea.hbm %s4, %s2520
          %s2523 = sshll.u32 %s2513, 4
          %s2524 = int_to_ptr.vmem [resolvable:$true] %s2523
          %2526 = dma.vmem_to_hbm [thread:$0]  %s2524, 16, %s2521, %s2511
        $region40: #{conv_lstm_classifier.1} parent=35 // pred_fallthru
          _
      $region36: #{conv_lstm_classifier.1} parent=5 // pred_fallthru
        _
      %p2527 = scmp.le.s32.totalorder 2, %s13
      // Predicated region
      $region41: #{conv_lstm_classifier.1} parent=5 // pred_check
        %p2528 = pneg %p2527
      $region42: #{conv_lstm_classifier.1} parent=5 // pred_check_branch
        %2530 = sbr.rel (%p2528) target = $region44
      $region43: #{conv_lstm_classifier.1} parent=5 // pred_region
        %s2531 = ssub.s32 %s13, 2
        // Predicated region
        $region45: #{conv_lstm_classifier.1} parent=43 // pred_check
          %p2532 = pneg %p131
        $region46: #{conv_lstm_classifier.1} parent=43 // pred_check_branch
          %2534 = sbr.rel (%p2532) target = $region48
        $region47: #{conv_lstm_classifier.1} parent=43 // pred_region
          %s2535 = sand.u32 %s116, 1
          %s2536 = scalar_lea.sflag [#allocation3], %s2535
          %s2537 = sand.u32 %s116, 1
          %s2538 = scalar_lea.vmem [#allocation2], %s2537
          %2539 = dma.done %s2536, 16
        $region48: #{conv_lstm_classifier.1} parent=43 // pred_fallthru
          _
      $region44: #{conv_lstm_classifier.1} parent=5 // pred_fallthru
        _
    $region6: #{conv_lstm_classifier.1} parent=1 // loop_footer
      %s17 = sadd.s32 1, %s13
    $region7: #{conv_lstm_classifier.1} parent=1 // loop_footer_branch
      %12 = sbr.rel target = $region3
    $region8: #{conv_lstm_classifier.1} parent=1 // loop_exit
      _
    %2540 = vsyncpa [#allocation3], 1
    %s2541 = scalar_lea.sflag [#allocation3], 1
    %2542 = vsyncpa %s2541, 1

</llo_original>
